<compile_context>
chip_gen: v6e
topology: v6e:2x2x1
jax: 0.10.0
libtpu: 0.0.40
codegen_flags: <defaults>
</compile_context>

<pallas_src>
import math

import jax
import jax.numpy as jnp
from jax import lax
from jax.experimental import pallas as pl
from jax.experimental.pallas import tpu as pltpu

HH = 4  # self.hh in the torch module


def _make_transformer_kernel(x_ref, y_ref, h0_ref,
                             wgx_ref, wgh_ref, bg_ref,
                             wqkv_x_ref, wqkv_y_ref, bqkv_ref,
                             wo_ref, bo_ref,
                             wfc1_ref, bfc1_ref, wfc2_ref, bfc2_ref,
                             gen_ref,
                             hout_ref,
                             h_sc):
    t = pl.program_id(0)
    d_ = wgh_ref.shape[0]          # d_model_ = d_model + bb_dim
    dk = d_ // HH

    # Initialise the recurrent state from h0 on the first step; afterwards it
    # stays resident in VMEM scratch across the whole sequence.
    @pl.when(t == 0)
    def _():
        h_sc[...] = h0_ref[...]

    x = x_ref[0]                   # (n_frames, d_model)
    y = y_ref[0]                   # (n_gts, bb_dim)
    now = x[0:1, :]                # (1, d_model)      == x[0]
    x_tail = x[1:, :]              # (n_gts, d_model)  == x[1:]
    h = h_sc[...]                  # (1, d_)

    # ----------------- LSTM-style gates: 2 fused matmuls --------------------
    gates = (jnp.dot(now, wgx_ref[...], preferred_element_type=jnp.float32)
             + jnp.dot(h, wgh_ref[...], preferred_element_type=jnp.float32)
             + bg_ref[...])                                   # (1, 4*d_)
    i_g = jax.nn.sigmoid(gates[:, 0 * d_:1 * d_])
    f_g = jax.nn.sigmoid(gates[:, 1 * d_:2 * d_])
    g_g = jnp.tanh(gates[:, 2 * d_:3 * d_])
    o_g = jax.nn.sigmoid(gates[:, 3 * d_:4 * d_])

    # ----------------- fused QKV projection ---------------------------------
    # cat([x[1:], y], dim=1) @ Wqkv == x_tail @ Wqkv[:d_model] + y @ Wqkv[d_model:]
    qkv = (jnp.dot(x_tail, wqkv_x_ref[...], preferred_element_type=jnp.float32)
           + jnp.dot(y, wqkv_y_ref[...], preferred_element_type=jnp.float32)
           + bqkv_ref[...])                                   # (n_gts, 3*d_)

    # ----------------- multi-head attention ---------------------------------
    inv_sqrt = 1.0 / math.sqrt(d_)                            # module: sqrt(d_model_)
    zh_list = []
    for hd in range(HH):
        q_h = qkv[:, hd * dk:(hd + 1) * dk]                   # (n_gts, dk)
        k_h = qkv[:, d_ + hd * dk:d_ + (hd + 1) * dk]
        v_h = qkv[:, 2 * d_ + hd * dk:2 * d_ + (hd + 1) * dk]
        s = lax.dot_general(q_h, k_h, (((1,), (1,)), ((), ())),
                            preferred_element_type=jnp.float32) * inv_sqrt
        # torch softmax(dim=1) on (hh, q, k) -> softmax over the QUERY axis.
        s_max = jnp.max(s, axis=0, keepdims=True)
        e = jnp.exp(s - s_max)
        p = e / jnp.sum(e, axis=0, keepdims=True)
        zh_list.append(jnp.dot(p, v_h, preferred_element_type=jnp.float32))
    # concat heads on lanes (== z.transpose(0,1).view(n_gts,-1)) + single Wo
    z = jnp.concatenate(zh_list, axis=1)                      # (n_gts, d_)
    z = jnp.dot(z, wo_ref[...], preferred_element_type=jnp.float32) + bo_ref[...]

    # ----------------- feed-forward ------------------------------------------
    z = jnp.maximum(jnp.dot(z, wfc1_ref[...], preferred_element_type=jnp.float32)
                    + bfc1_ref[...], 0.0)
    z = jnp.dot(z, wfc2_ref[...], preferred_element_type=jnp.float32) + bfc2_ref[...]

    # ----------------- gen-weighted reduction + gated state update ----------
    c = jnp.sum(gen_ref[...] * z, axis=0, keepdims=True)      # (1, d_)
    h_new = o_g * jnp.tanh(f_g * c + i_g * g_g)               # (1, d_)
    h_sc[...] = h_new
    hout_ref[0] = h_new


# ----------------------------------------------------------------------------
# Parameter handling
# ----------------------------------------------------------------------------
def _linear_params(key, fan_in, fan_out):
    # Deterministic PyTorch-nn.Linear-style init (uniform ±1/sqrt(fan_in)).
    kw, kb = jax.random.split(key)
    bound = 1.0 / math.sqrt(fan_in)
    w = jax.random.uniform(kw, (fan_in, fan_out), jnp.float32, -bound, bound)  # W^T layout
    b = jax.random.uniform(kb, (fan_out,), jnp.float32, -bound, bound)
    return w, b


def init_params(key, d_model, n_gts, bb_dim):
    d_ = d_model + bb_dim
    specs = [('wii', d_model, d_), ('whi', d_, d_),
             ('wif', d_model, d_), ('whf', d_, d_),
             ('wig', d_model, d_), ('whg', d_, d_),
             ('wio', d_model, d_), ('who', d_, d_),
             ('wq', d_, d_), ('wk', d_, d_), ('wv', d_, d_), ('wo', d_, d_),
             ('fc1', d_, 2 * d_), ('fc2', 2 * d_, d_)]
    keys = jax.random.split(key, len(specs) + 1)
    params = {}
    for (name, fi, fo), k in zip(specs, keys[:-1]):
        params[name] = _linear_params(k, fi, fo)
    params['gen'] = jax.random.normal(keys[-1], (n_gts, d_), jnp.float32)
    return params


def _pack_params(params, d_model, bb_dim):
    d_ = d_model + bb_dim
    w = {k: v[0] for k, v in params.items() if k != 'gen'}
    b = {k: v[1] for k, v in params.items() if k != 'gen'}
    wgx = jnp.concatenate([w['wii'], w['wif'], w['wig'], w['wio']], axis=1)  # (d_model, 4d_)
    wgh = jnp.concatenate([w['whi'], w['whf'], w['whg'], w['who']], axis=1)  # (d_, 4d_)
    bg = jnp.concatenate([b['wii'] + b['whi'], b['wif'] + b['whf'],
                          b['wig'] + b['whg'], b['wio'] + b['who']]).reshape(1, 4 * d_)
    wqkv = jnp.concatenate([w['wq'], w['wk'], w['wv']], axis=1)              # (d_, 3d_)
    bqkv = jnp.concatenate([b['wq'], b['wk'], b['wv']]).reshape(1, 3 * d_)
    return dict(
        wgx=wgx, wgh=wgh, bg=bg,
        wqkv_x=wqkv[:d_model, :], wqkv_y=wqkv[d_model:, :], bqkv=bqkv,
        wo=w['wo'], bo=b['wo'].reshape(1, d_),
        wfc1=w['fc1'], bfc1=b['fc1'].reshape(1, 2 * d_),
        wfc2=w['fc2'], bfc2=b['fc2'].reshape(1, d_),
        gen=params['gen'])


# ----------------------------------------------------------------------------
# Wrapper
# ----------------------------------------------------------------------------
def make_transformer_sequence(x_seq, y_seq, h0, params):
    """Runs T recurrent applications of MakeTransformer.forward in ONE kernel.

    x_seq : (T, n_frames, d_model)
    y_seq : (T, n_gts, bb_dim)
    h0    : (d_model_,)
    Returns (per-step h[-bb_dim:] of shape (T, bb_dim), all h states (T, d_model_)).
    """
    T, n_frames, d_model = x_seq.shape
    _, n_gts, bb_dim = y_seq.shape
    d_ = d_model + bb_dim
    assert n_frames - 1 == n_gts, "torch.cat([x[1:], y], dim=1) requires n_frames-1 == n_gts"
    assert d_ % HH == 0

    p = _pack_params(params, d_model, bb_dim)
    f32 = jnp.float32
    args = [x_seq.astype(f32), y_seq.astype(f32), h0.reshape(1, d_).astype(f32),
            p['wgx'], p['wgh'], p['bg'],
            p['wqkv_x'], p['wqkv_y'], p['bqkv'],
            p['wo'], p['bo'], p['wfc1'], p['bfc1'], p['wfc2'], p['bfc2'],
            p['gen']]

    def const(shape):  # weight/bias: whole array resident, loaded once (constant index_map)
        return pl.BlockSpec(shape, lambda t, _n=len(shape): (0,) * _n)

    in_specs = [
        pl.BlockSpec((1, n_frames, d_model), lambda t: (t, 0, 0)),   # x_seq (per-step slice)
        pl.BlockSpec((1, n_gts, bb_dim), lambda t: (t, 0, 0)),       # y_seq (per-step slice)
        const((1, d_)),                                              # h0
        const((d_model, 4 * d_)), const((d_, 4 * d_)), const((1, 4 * d_)),   # gates
        const((d_model, 3 * d_)), const((bb_dim, 3 * d_)), const((1, 3 * d_)),  # qkv
        const((d_, d_)), const((1, d_)),                             # wo / bo
        const((d_, 2 * d_)), const((1, 2 * d_)),                     # fc1
        const((2 * d_, d_)), const((1, d_)),                         # fc2
        const((n_gts, d_)),                                          # gen
    ]
    out_spec = pl.BlockSpec((1, 1, d_), lambda t: (t, 0, 0))

    h_all = pl.pallas_call(
        _make_transformer_kernel,
        grid=(T,),
        in_specs=in_specs,
        out_specs=out_spec,
        out_shape=jax.ShapeDtypeStruct((T, 1, d_), jnp.float32),
        scratch_shapes=[pltpu.VMEM((1, d_), jnp.float32)],           # recurrent h, VMEM-resident
        compiler_params=pltpu.CompilerParams(
            dimension_semantics=("arbitrary",),                      # recurrence -> sequential
            vmem_limit_bytes=32 * 1024 * 1024),
    )(*args)
    h_all = h_all.reshape(T, d_)
    return h_all[:, -bb_dim:], h_all


def make_transformer_forward(x, y, h, params):
    """Single-step forward, exactly like the torch module's forward(x, y)."""
    out, h_all = make_transformer_sequence(x[None], y[None], h, params)
    return out[0], h_all[0]


# ----------------------------------------------------------------------------
# Pure-JAX mirror of the torch forward, for verification
# ----------------------------------------------------------------------------
def reference_step(x, y, h, params):
    d_model = x.shape[1]
    bb_dim = y.shape[1]
    d_ = d_model + bb_dim
    n_gts = y.shape[0]
    dk = d_ // HH

    def lin(v, name):
        w, b = params[name]
        return v @ w + b

    now = x[0]
    xc = jnp.concatenate([x[1:], y], axis=1)
    i = jax.nn.sigmoid(lin(now, 'wii') + lin(h, 'whi'))
    f = jax.nn.sigmoid(lin(now, 'wif') + lin(h, 'whf'))
    g = jnp.tanh(lin(now, 'wig') + lin(h, 'whg'))
    o = jax.nn.sigmoid(lin(now, 'wio') + lin(h, 'who'))

    q, k, v = lin(xc, 'wq'), lin(xc, 'wk'), lin(xc, 'wv')
    qh = q.reshape(n_gts, HH, dk).transpose(1, 0, 2)   # == .t().view(hh,dk,n).transpose(1,2)
    kh = k.reshape(n_gts, HH, dk).transpose(1, 0, 2)
    vh = v.reshape(n_gts, HH, dk).transpose(1, 0, 2)
    s = jnp.einsum('hqd,hkd->hqk', qh, kh) / math.sqrt(d_)
    p = jax.nn.softmax(s, axis=1)                      # softmax over the QUERY axis (dim=1)
    z = jnp.einsum('hqk,hkd->hqd', p, vh)
    z = z.transpose(1, 0, 2).reshape(n_gts, d_)
    z = lin(z, 'wo')
    z = jnp.maximum(lin(z, 'fc1'), 0.0)
    z = lin(z, 'fc2')
    c = jnp.sum(params['gen'] * z, axis=0)
    return o * jnp.tanh(f * c + i * g)


if __name__ == "__main__":
    # Small shapes consistent with the module: d_model_ = 32 divisible by hh = 4.
    d_model, n_gts, bb_dim, T = 24, 8, 8, 4
    n_frames = n_gts + 1
    d_ = d_model + bb_dim

    root = jax.random.PRNGKey(0)
    kp, kx, ky = jax.random.split(root, 3)
    params = init_params(kp, d_model, n_gts, bb_dim)
    x_seq = jax.random.normal(kx, (T, n_frames, d_model), jnp.float32)
    y_seq = jax.random.normal(ky, (T, n_gts, bb_dim), jnp.float32)
    h0 = jnp.zeros((d_,), jnp.float32)                  # clear_states()

    out, h_all = make_transformer_sequence(x_seq, y_seq, h0, params)
    out, h_all = jax.block_until_ready((out, h_all))
    assert out.shape == (T, bb_dim)
    assert h_all.shape == (T, d_)

    # Verify against the pure-JAX mirror of the torch forward, run recurrently.
    h_state = h0
    refs = []
    for t in range(T):
        h_state = reference_step(x_seq[t], y_seq[t], h_state, params)
        refs.append(h_state)
    h_ref = jnp.stack(refs)
    max_err = float(jnp.max(jnp.abs(h_all - h_ref)))
    assert jnp.allclose(h_all, h_ref, atol=1e-4, rtol=1e-4), f"max_err={max_err}"

    print("KERNEL_OK")
</pallas_src>

<mosaic_0001>
module attributes {stable_mosaic.version = 11 : i64} {
  func.func @_make_transformer_kernel(%arg0: i32, %arg1: memref<1x9x24xf32, #tpu.memory_space<vmem>>, %arg2: memref<1x8x8xf32, #tpu.memory_space<vmem>>, %arg3: memref<1x32xf32, #tpu.memory_space<vmem>>, %arg4: memref<24x128xf32, #tpu.memory_space<vmem>>, %arg5: memref<32x128xf32, #tpu.memory_space<vmem>>, %arg6: memref<1x128xf32, #tpu.memory_space<vmem>>, %arg7: memref<24x96xf32, #tpu.memory_space<vmem>>, %arg8: memref<8x96xf32, #tpu.memory_space<vmem>>, %arg9: memref<1x96xf32, #tpu.memory_space<vmem>>, %arg10: memref<32x32xf32, #tpu.memory_space<vmem>>, %arg11: memref<1x32xf32, #tpu.memory_space<vmem>>, %arg12: memref<32x64xf32, #tpu.memory_space<vmem>>, %arg13: memref<1x64xf32, #tpu.memory_space<vmem>>, %arg14: memref<64x32xf32, #tpu.memory_space<vmem>>, %arg15: memref<1x32xf32, #tpu.memory_space<vmem>>, %arg16: memref<8x32xf32, #tpu.memory_space<vmem>>, %arg17: memref<1x1x32xf32, #tpu.memory_space<vmem>>, %arg18: memref<1x32xf32, #tpu.memory_space<vmem>>) attributes {dimension_semantics = [#tpu.dimension_semantics<arbitrary>], iteration_bounds = array<i64: 4>, scalar_prefetch = 0 : i64, scratch_operands = 1 : i64, tpu.core_type = #tpu.core_type<tc>, window_params = [{transform_indices = @transform_0, window_bounds = array<i64: 1, 9, 24>}, {transform_indices = @transform_1, window_bounds = array<i64: 1, 8, 8>}, {pipeline_mode = #tpu.pipeline_mode<synchronous>, transform_indices = @transform_2, window_bounds = array<i64: 1, 32>}, {pipeline_mode = #tpu.pipeline_mode<synchronous>, transform_indices = @transform_3, window_bounds = array<i64: 24, 128>}, {pipeline_mode = #tpu.pipeline_mode<synchronous>, transform_indices = @transform_4, window_bounds = array<i64: 32, 128>}, {pipeline_mode = #tpu.pipeline_mode<synchronous>, transform_indices = @transform_5, window_bounds = array<i64: 1, 128>}, {pipeline_mode = #tpu.pipeline_mode<synchronous>, transform_indices = @transform_6, window_bounds = array<i64: 24, 96>}, {pipeline_mode = #tpu.pipeline_mode<synchronous>, transform_indices = @transform_7, window_bounds = array<i64: 8, 96>}, {pipeline_mode = #tpu.pipeline_mode<synchronous>, transform_indices = @transform_8, window_bounds = array<i64: 1, 96>}, {pipeline_mode = #tpu.pipeline_mode<synchronous>, transform_indices = @transform_9, window_bounds = array<i64: 32, 32>}, {pipeline_mode = #tpu.pipeline_mode<synchronous>, transform_indices = @transform_10, window_bounds = array<i64: 1, 32>}, {pipeline_mode = #tpu.pipeline_mode<synchronous>, transform_indices = @transform_11, window_bounds = array<i64: 32, 64>}, {pipeline_mode = #tpu.pipeline_mode<synchronous>, transform_indices = @transform_12, window_bounds = array<i64: 1, 64>}, {pipeline_mode = #tpu.pipeline_mode<synchronous>, transform_indices = @transform_13, window_bounds = array<i64: 64, 32>}, {pipeline_mode = #tpu.pipeline_mode<synchronous>, transform_indices = @transform_14, window_bounds = array<i64: 1, 32>}, {pipeline_mode = #tpu.pipeline_mode<synchronous>, transform_indices = @transform_15, window_bounds = array<i64: 8, 32>}, {transform_indices = @transform_16, window_bounds = array<i64: 1, 1, 32>}]} {
    %c0_i32 = arith.constant 0 : i32
    %0 = arith.cmpi eq, %arg0, %c0_i32 : i32
    %1 = arith.extui %0 : i1 to i32
    %c0_i32_0 = arith.constant 0 : i32
    %2 = arith.cmpi ne, %1, %c0_i32_0 : i32
    scf.if %2 {
      %c0_70 = arith.constant 0 : index
      %c0_71 = arith.constant 0 : index
      %140 = vector.load %arg3[%c0_70, %c0_71] : memref<1x32xf32, #tpu.memory_space<vmem>>, vector<1x32xf32>
      %c0_72 = arith.constant 0 : index
      %c0_73 = arith.constant 0 : index
      %141 = vector.load %arg18[%c0_72, %c0_73] : memref<1x32xf32, #tpu.memory_space<vmem>>, vector<1x32xf32>
      tpu.vector_store %arg18[%c0_72, %c0_73], %140 {strides = array<i32>} : memref<1x32xf32, #tpu.memory_space<vmem>>, vector<1x32xf32>,
    } else {
    }
    %c0 = arith.constant 0 : index
    %c0_1 = arith.constant 0 : index
    %c0_2 = arith.constant 0 : index
    %3 = vector.load %arg1[%c0, %c0_1, %c0_2] : memref<1x9x24xf32, #tpu.memory_space<vmem>>, vector<1x9x24xf32>
    %4 = vector.shape_cast %3 : vector<1x9x24xf32> to vector<9x24xf32>
    %c0_3 = arith.constant 0 : index
    %c0_4 = arith.constant 0 : index
    %c0_5 = arith.constant 0 : index
    %5 = vector.load %arg2[%c0_3, %c0_4, %c0_5] : memref<1x8x8xf32, #tpu.memory_space<vmem>>, vector<1x8x8xf32>
    %6 = vector.shape_cast %5 : vector<1x8x8xf32> to vector<8x8xf32>
    %7 = vector.extract_strided_slice %4 {offsets = [0, 0], sizes = [1, 24], strides = [1, 1]} : vector<9x24xf32> to vector<1x24xf32>
    %8 = vector.extract_strided_slice %4 {offsets = [1, 0], sizes = [8, 24], strides = [1, 1]} : vector<9x24xf32> to vector<8x24xf32>
    %c0_6 = arith.constant 0 : index
    %c0_7 = arith.constant 0 : index
    %9 = vector.load %arg18[%c0_6, %c0_7] : memref<1x32xf32, #tpu.memory_space<vmem>>, vector<1x32xf32>
    %c0_8 = arith.constant 0 : index
    %c0_9 = arith.constant 0 : index
    %10 = vector.load %arg4[%c0_8, %c0_9] : memref<24x128xf32, #tpu.memory_space<vmem>>, vector<24x128xf32>
    %cst = arith.constant dense<0.000000e+00> : vector<1x128xf32>
    %11 = tpu.matmul %7, %10, %cst {dimension_numbers = #tpu.dot_dimension_numbers<[1], [0], [0], [1], [0, 0, 1, 1], [], []>} : vector<1x24xf32>, vector<24x128xf32>, vector<1x128xf32> -> vector<1x128xf32>
    %c0_10 = arith.constant 0 : index
    %c0_11 = arith.constant 0 : index
    %12 = vector.load %arg5[%c0_10, %c0_11] : memref<32x128xf32, #tpu.memory_space<vmem>>, vector<32x128xf32>
    %cst_12 = arith.constant dense<0.000000e+00> : vector<1x128xf32>
    %13 = tpu.matmul %9, %12, %cst_12 {dimension_numbers = #tpu.dot_dimension_numbers<[1], [0], [0], [1], [0, 0, 1, 1], [], []>} : vector<1x32xf32>, vector<32x128xf32>, vector<1x128xf32> -> vector<1x128xf32>
    %14 = arith.addf %11, %13 : vector<1x128xf32>
    %c0_13 = arith.constant 0 : index
    %c0_14 = arith.constant 0 : index
    %15 = vector.load %arg6[%c0_13, %c0_14] : memref<1x128xf32, #tpu.memory_space<vmem>>, vector<1x128xf32>
    %16 = arith.addf %14, %15 : vector<1x128xf32>
    %17 = vector.extract_strided_slice %16 {offsets = [0, 0], sizes = [1, 32], strides = [1, 1]} : vector<1x128xf32> to vector<1x32xf32>
    %18 = arith.negf %17 : vector<1x32xf32>
    %19 = math.exp %18 : vector<1x32xf32>
    %cst_15 = arith.constant 1.000000e+00 : f32
    %20 = vector.broadcast %cst_15 : f32 to vector<1x32xf32>
    %21 = arith.addf %20, %19 : vector<1x32xf32>
    %22 = arith.divf %20, %21 : vector<1x32xf32>
    %23 = vector.extract_strided_slice %16 {offsets = [0, 32], sizes = [1, 32], strides = [1, 1]} : vector<1x128xf32> to vector<1x32xf32>
    %24 = arith.negf %23 : vector<1x32xf32>
    %25 = math.exp %24 : vector<1x32xf32>
    %cst_16 = arith.constant 1.000000e+00 : f32
    %26 = vector.broadcast %cst_16 : f32 to vector<1x32xf32>
    %27 = arith.addf %26, %25 : vector<1x32xf32>
    %28 = arith.divf %26, %27 : vector<1x32xf32>
    %29 = vector.extract_strided_slice %16 {offsets = [0, 64], sizes = [1, 32], strides = [1, 1]} : vector<1x128xf32> to vector<1x32xf32>
    %30 = math.tanh %29 : vector<1x32xf32>
    %31 = vector.extract_strided_slice %16 {offsets = [0, 96], sizes = [1, 32], strides = [1, 1]} : vector<1x128xf32> to vector<1x32xf32>
    %32 = arith.negf %31 : vector<1x32xf32>
    %33 = math.exp %32 : vector<1x32xf32>
    %cst_17 = arith.constant 1.000000e+00 : f32
    %34 = vector.broadcast %cst_17 : f32 to vector<1x32xf32>
    %35 = arith.addf %34, %33 : vector<1x32xf32>
    %36 = arith.divf %34, %35 : vector<1x32xf32>
    %c0_18 = arith.constant 0 : index
    %c0_19 = arith.constant 0 : index
    %37 = vector.load %arg7[%c0_18, %c0_19] : memref<24x96xf32, #tpu.memory_space<vmem>>, vector<24x96xf32>
    %cst_20 = arith.constant dense<0.000000e+00> : vector<8x96xf32>
    %38 = tpu.matmul %8, %37, %cst_20 {dimension_numbers = #tpu.dot_dimension_numbers<[1], [0], [0], [1], [0, 0, 1, 1], [], []>} : vector<8x24xf32>, vector<24x96xf32>, vector<8x96xf32> -> vector<8x96xf32>
    %c0_21 = arith.constant 0 : index
    %c0_22 = arith.constant 0 : index
    %39 = vector.load %arg8[%c0_21, %c0_22] : memref<8x96xf32, #tpu.memory_space<vmem>>, vector<8x96xf32>
    %cst_23 = arith.constant dense<0.000000e+00> : vector<8x96xf32>
    %40 = tpu.matmul %6, %39, %cst_23 {dimension_numbers = #tpu.dot_dimension_numbers<[1], [0], [0], [1], [0, 0, 1, 1], [], []>} : vector<8x8xf32>, vector<8x96xf32>, vector<8x96xf32> -> vector<8x96xf32>
    %41 = arith.addf %38, %40 : vector<8x96xf32>
    %c0_24 = arith.constant 0 : index
    %c0_25 = arith.constant 0 : index
    %42 = vector.load %arg9[%c0_24, %c0_25] : memref<1x96xf32, #tpu.memory_space<vmem>>, vector<1x96xf32>
    %43 = vector.broadcast %42 : vector<1x96xf32> to vector<8x96xf32>
    %44 = arith.addf %41, %43 : vector<8x96xf32>
    %45 = vector.extract_strided_slice %44 {offsets = [0, 0], sizes = [8, 8], strides = [1, 1]} : vector<8x96xf32> to vector<8x8xf32>
    %46 = vector.extract_strided_slice %44 {offsets = [0, 32], sizes = [8, 8], strides = [1, 1]} : vector<8x96xf32> to vector<8x8xf32>
    %47 = vector.extract_strided_slice %44 {offsets = [0, 64], sizes = [8, 8], strides = [1, 1]} : vector<8x96xf32> to vector<8x8xf32>
    %cst_26 = arith.constant dense<0.000000e+00> : vector<8x8xf32>
    %48 = tpu.matmul %45, %46, %cst_26 {dimension_numbers = #tpu.dot_dimension_numbers<[1], [1], [0], [0], [0, 0, 1, 0], [], []>} : vector<8x8xf32>, vector<8x8xf32>, vector<8x8xf32> -> vector<8x8xf32>
    %cst_27 = arith.constant 0.176776692 : f32
    %49 = vector.broadcast %cst_27 : f32 to vector<8x8xf32>
    %50 = arith.mulf %48, %49 : vector<8x8xf32>
    %cst_28 = arith.constant dense<0xFF800000> : vector<8xf32>
    %51 = vector.multi_reduction <maximumf>, %50, %cst_28 [0] : vector<8x8xf32> to vector<8xf32>
    %52 = vector.shape_cast %51 : vector<8xf32> to vector<1x8xf32>
    %53 = vector.broadcast %52 : vector<1x8xf32> to vector<8x8xf32>
    %54 = arith.subf %50, %53 : vector<8x8xf32>
    %55 = math.exp %54 : vector<8x8xf32>
    %cst_29 = arith.constant dense<0.000000e+00> : vector<8xf32>
    %56 = vector.multi_reduction <add>, %55, %cst_29 [0] : vector<8x8xf32> to vector<8xf32>
    %57 = vector.shape_cast %56 : vector<8xf32> to vector<1x8xf32>
    %58 = vector.broadcast %57 : vector<1x8xf32> to vector<8x8xf32>
    %59 = arith.divf %55, %58 : vector<8x8xf32>
    %cst_30 = arith.constant dense<0.000000e+00> : vector<8x8xf32>
    %60 = tpu.matmul %59, %47, %cst_30 {dimension_numbers = #tpu.dot_dimension_numbers<[1], [0], [0], [1], [0, 0, 1, 1], [], []>} : vector<8x8xf32>, vector<8x8xf32>, vector<8x8xf32> -> vector<8x8xf32>
    %61 = vector.extract_strided_slice %44 {offsets = [0, 8], sizes = [8, 8], strides = [1, 1]} : vector<8x96xf32> to vector<8x8xf32>
    %62 = vector.extract_strided_slice %44 {offsets = [0, 40], sizes = [8, 8], strides = [1, 1]} : vector<8x96xf32> to vector<8x8xf32>
    %63 = vector.extract_strided_slice %44 {offsets = [0, 72], sizes = [8, 8], strides = [1, 1]} : vector<8x96xf32> to vector<8x8xf32>
    %cst_31 = arith.constant dense<0.000000e+00> : vector<8x8xf32>
    %64 = tpu.matmul %61, %62, %cst_31 {dimension_numbers = #tpu.dot_dimension_numbers<[1], [1], [0], [0], [0, 0, 1, 0], [], []>} : vector<8x8xf32>, vector<8x8xf32>, vector<8x8xf32> -> vector<8x8xf32>
    %cst_32 = arith.constant 0.176776692 : f32
    %65 = vector.broadcast %cst_32 : f32 to vector<8x8xf32>
    %66 = arith.mulf %64, %65 : vector<8x8xf32>
    %cst_33 = arith.constant dense<0xFF800000> : vector<8xf32>
    %67 = vector.multi_reduction <maximumf>, %66, %cst_33 [0] : vector<8x8xf32> to vector<8xf32>
    %68 = vector.shape_cast %67 : vector<8xf32> to vector<1x8xf32>
    %69 = vector.broadcast %68 : vector<1x8xf32> to vector<8x8xf32>
    %70 = arith.subf %66, %69 : vector<8x8xf32>
    %71 = math.exp %70 : vector<8x8xf32>
    %cst_34 = arith.constant dense<0.000000e+00> : vector<8xf32>
    %72 = vector.multi_reduction <add>, %71, %cst_34 [0] : vector<8x8xf32> to vector<8xf32>
    %73 = vector.shape_cast %72 : vector<8xf32> to vector<1x8xf32>
    %74 = vector.broadcast %73 : vector<1x8xf32> to vector<8x8xf32>
    %75 = arith.divf %71, %74 : vector<8x8xf32>
    %cst_35 = arith.constant dense<0.000000e+00> : vector<8x8xf32>
    %76 = tpu.matmul %75, %63, %cst_35 {dimension_numbers = #tpu.dot_dimension_numbers<[1], [0], [0], [1], [0, 0, 1, 1], [], []>} : vector<8x8xf32>, vector<8x8xf32>, vector<8x8xf32> -> vector<8x8xf32>
    %77 = vector.extract_strided_slice %44 {offsets = [0, 16], sizes = [8, 8], strides = [1, 1]} : vector<8x96xf32> to vector<8x8xf32>
    %78 = vector.extract_strided_slice %44 {offsets = [0, 48], sizes = [8, 8], strides = [1, 1]} : vector<8x96xf32> to vector<8x8xf32>
    %79 = vector.extract_strided_slice %44 {offsets = [0, 80], sizes = [8, 8], strides = [1, 1]} : vector<8x96xf32> to vector<8x8xf32>
    %cst_36 = arith.constant dense<0.000000e+00> : vector<8x8xf32>
    %80 = tpu.matmul %77, %78, %cst_36 {dimension_numbers = #tpu.dot_dimension_numbers<[1], [1], [0], [0], [0, 0, 1, 0], [], []>} : vector<8x8xf32>, vector<8x8xf32>, vector<8x8xf32> -> vector<8x8xf32>
    %cst_37 = arith.constant 0.176776692 : f32
    %81 = vector.broadcast %cst_37 : f32 to vector<8x8xf32>
    %82 = arith.mulf %80, %81 : vector<8x8xf32>
    %cst_38 = arith.constant dense<0xFF800000> : vector<8xf32>
    %83 = vector.multi_reduction <maximumf>, %82, %cst_38 [0] : vector<8x8xf32> to vector<8xf32>
    %84 = vector.shape_cast %83 : vector<8xf32> to vector<1x8xf32>
    %85 = vector.broadcast %84 : vector<1x8xf32> to vector<8x8xf32>
    %86 = arith.subf %82, %85 : vector<8x8xf32>
    %87 = math.exp %86 : vector<8x8xf32>
    %cst_39 = arith.constant dense<0.000000e+00> : vector<8xf32>
    %88 = vector.multi_reduction <add>, %87, %cst_39 [0] : vector<8x8xf32> to vector<8xf32>
    %89 = vector.shape_cast %88 : vector<8xf32> to vector<1x8xf32>
    %90 = vector.broadcast %89 : vector<1x8xf32> to vector<8x8xf32>
    %91 = arith.divf %87, %90 : vector<8x8xf32>
    %cst_40 = arith.constant dense<0.000000e+00> : vector<8x8xf32>
    %92 = tpu.matmul %91, %79, %cst_40 {dimension_numbers = #tpu.dot_dimension_numbers<[1], [0], [0], [1], [0, 0, 1, 1], [], []>} : vector<8x8xf32>, vector<8x8xf32>, vector<8x8xf32> -> vector<8x8xf32>
    %93 = vector.extract_strided_slice %44 {offsets = [0, 24], sizes = [8, 8], strides = [1, 1]} : vector<8x96xf32> to vector<8x8xf32>
    %94 = vector.extract_strided_slice %44 {offsets = [0, 56], sizes = [8, 8], strides = [1, 1]} : vector<8x96xf32> to vector<8x8xf32>
    %95 = vector.extract_strided_slice %44 {offsets = [0, 88], sizes = [8, 8], strides = [1, 1]} : vector<8x96xf32> to vector<8x8xf32>
    %cst_41 = arith.constant dense<0.000000e+00> : vector<8x8xf32>
    %96 = tpu.matmul %93, %94, %cst_41 {dimension_numbers = #tpu.dot_dimension_numbers<[1], [1], [0], [0], [0, 0, 1, 0], [], []>} : vector<8x8xf32>, vector<8x8xf32>, vector<8x8xf32> -> vector<8x8xf32>
    %cst_42 = arith.constant 0.176776692 : f32
    %97 = vector.broadcast %cst_42 : f32 to vector<8x8xf32>
    %98 = arith.mulf %96, %97 : vector<8x8xf32>
    %cst_43 = arith.constant dense<0xFF800000> : vector<8xf32>
    %99 = vector.multi_reduction <maximumf>, %98, %cst_43 [0] : vector<8x8xf32> to vector<8xf32>
    %100 = vector.shape_cast %99 : vector<8xf32> to vector<1x8xf32>
    %101 = vector.broadcast %100 : vector<1x8xf32> to vector<8x8xf32>
    %102 = arith.subf %98, %101 : vector<8x8xf32>
    %103 = math.exp %102 : vector<8x8xf32>
    %cst_44 = arith.constant dense<0.000000e+00> : vector<8xf32>
    %104 = vector.multi_reduction <add>, %103, %cst_44 [0] : vector<8x8xf32> to vector<8xf32>
    %105 = vector.shape_cast %104 : vector<8xf32> to vector<1x8xf32>
    %106 = vector.broadcast %105 : vector<1x8xf32> to vector<8x8xf32>
    %107 = arith.divf %103, %106 : vector<8x8xf32>
    %cst_45 = arith.constant dense<0.000000e+00> : vector<8x8xf32>
    %108 = tpu.matmul %107, %95, %cst_45 {dimension_numbers = #tpu.dot_dimension_numbers<[1], [0], [0], [1], [0, 0, 1, 1], [], []>} : vector<8x8xf32>, vector<8x8xf32>, vector<8x8xf32> -> vector<8x8xf32>
    %109 = tpu.concatenate %60, %76, %92, %108 in 1 : vector<8x8xf32>, vector<8x8xf32>, vector<8x8xf32>, vector<8x8xf32> -> vector<8x32xf32>
    %c0_46 = arith.constant 0 : index
    %c0_47 = arith.constant 0 : index
    %110 = vector.load %arg10[%c0_46, %c0_47] : memref<32x32xf32, #tpu.memory_space<vmem>>, vector<32x32xf32>
    %cst_48 = arith.constant dense<0.000000e+00> : vector<8x32xf32>
    %111 = tpu.matmul %109, %110, %cst_48 {dimension_numbers = #tpu.dot_dimension_numbers<[1], [0], [0], [1], [0, 0, 1, 1], [], []>} : vector<8x32xf32>, vector<32x32xf32>, vector<8x32xf32> -> vector<8x32xf32>
    %c0_49 = arith.constant 0 : index
    %c0_50 = arith.constant 0 : index
    %112 = vector.load %arg11[%c0_49, %c0_50] : memref<1x32xf32, #tpu.memory_space<vmem>>, vector<1x32xf32>
    %113 = vector.broadcast %112 : vector<1x32xf32> to vector<8x32xf32>
    %114 = arith.addf %111, %113 : vector<8x32xf32>
    %c0_51 = arith.constant 0 : index
    %c0_52 = arith.constant 0 : index
    %115 = vector.load %arg12[%c0_51, %c0_52] : memref<32x64xf32, #tpu.memory_space<vmem>>, vector<32x64xf32>
    %cst_53 = arith.constant dense<0.000000e+00> : vector<8x64xf32>
    %116 = tpu.matmul %114, %115, %cst_53 {dimension_numbers = #tpu.dot_dimension_numbers<[1], [0], [0], [1], [0, 0, 1, 1], [], []>} : vector<8x32xf32>, vector<32x64xf32>, vector<8x64xf32> -> vector<8x64xf32>
    %c0_54 = arith.constant 0 : index
    %c0_55 = arith.constant 0 : index
    %117 = vector.load %arg13[%c0_54, %c0_55] : memref<1x64xf32, #tpu.memory_space<vmem>>, vector<1x64xf32>
    %118 = vector.broadcast %117 : vector<1x64xf32> to vector<8x64xf32>
    %119 = arith.addf %116, %118 : vector<8x64xf32>
    %cst_56 = arith.constant 0.000000e+00 : f32
    %120 = vector.broadcast %cst_56 : f32 to vector<8x64xf32>
    %121 = arith.maximumf %119, %120 : vector<8x64xf32>
    %c0_57 = arith.constant 0 : index
    %c0_58 = arith.constant 0 : index
    %122 = vector.load %arg14[%c0_57, %c0_58] : memref<64x32xf32, #tpu.memory_space<vmem>>, vector<64x32xf32>
    %cst_59 = arith.constant dense<0.000000e+00> : vector<8x32xf32>
    %123 = tpu.matmul %121, %122, %cst_59 {dimension_numbers = #tpu.dot_dimension_numbers<[1], [0], [0], [1], [0, 0, 1, 1], [], []>} : vector<8x64xf32>, vector<64x32xf32>, vector<8x32xf32> -> vector<8x32xf32>
    %c0_60 = arith.constant 0 : index
    %c0_61 = arith.constant 0 : index
    %124 = vector.load %arg15[%c0_60, %c0_61] : memref<1x32xf32, #tpu.memory_space<vmem>>, vector<1x32xf32>
    %125 = vector.broadcast %124 : vector<1x32xf32> to vector<8x32xf32>
    %126 = arith.addf %123, %125 : vector<8x32xf32>
    %c0_62 = arith.constant 0 : index
    %c0_63 = arith.constant 0 : index
    %127 = vector.load %arg16[%c0_62, %c0_63] : memref<8x32xf32, #tpu.memory_space<vmem>>, vector<8x32xf32>
    %128 = arith.mulf %127, %126 : vector<8x32xf32>
    %cst_64 = arith.constant dense<0.000000e+00> : vector<32xf32>
    %129 = vector.multi_reduction <add>, %128, %cst_64 [0] : vector<8x32xf32> to vector<32xf32>
    %130 = vector.shape_cast %129 : vector<32xf32> to vector<1x32xf32>
    %131 = arith.mulf %28, %130 : vector<1x32xf32>
    %132 = arith.mulf %22, %30 : vector<1x32xf32>
    %133 = arith.addf %131, %132 : vector<1x32xf32>
    %134 = math.tanh %133 : vector<1x32xf32>
    %135 = arith.mulf %36, %134 : vector<1x32xf32>
    %c0_65 = arith.constant 0 : index
    %c0_66 = arith.constant 0 : index
    %136 = vector.load %arg18[%c0_65, %c0_66] : memref<1x32xf32, #tpu.memory_space<vmem>>, vector<1x32xf32>
    tpu.vector_store %arg18[%c0_65, %c0_66], %135 {strides = array<i32>} : memref<1x32xf32, #tpu.memory_space<vmem>>, vector<1x32xf32>,
    %c0_67 = arith.constant 0 : index
    %c0_68 = arith.constant 0 : index
    %c0_69 = arith.constant 0 : index
    %137 = vector.load %arg17[%c0_67, %c0_68, %c0_69] : memref<1x1x32xf32, #tpu.memory_space<vmem>>, vector<1x1x32xf32>
    %138 = vector.shape_cast %137 : vector<1x1x32xf32> to vector<1x32xf32>
    %139 = vector.shape_cast %135 : vector<1x32xf32> to vector<1x1x32xf32>
    tpu.vector_store %arg17[%c0_67, %c0_68, %c0_69], %139 {strides = array<i32>} : memref<1x1x32xf32, #tpu.memory_space<vmem>>, vector<1x1x32xf32>,
    return
  }
  func.func @transform_0(%arg0: i32) -> (i32, i32, i32) {
    %c0_i32 = arith.constant 0 : i32
    %c0_i32_0 = arith.constant 0 : i32
    %c0_i32_1 = arith.constant 0 : i32
    return %arg0, %c0_i32, %c0_i32_0 : i32, i32, i32
  }
  func.func @transform_1(%arg0: i32) -> (i32, i32, i32) {
    %c0_i32 = arith.constant 0 : i32
    %c0_i32_0 = arith.constant 0 : i32
    %c0_i32_1 = arith.constant 0 : i32
    return %arg0, %c0_i32, %c0_i32_0 : i32, i32, i32
  }
  func.func @transform_2(%arg0: i32) -> (i32, i32) {
    %c0_i32 = arith.constant 0 : i32
    %c0_i32_0 = arith.constant 0 : i32
    %c0_i32_1 = arith.constant 0 : i32
    return %c0_i32, %c0_i32_0 : i32, i32
  }
  func.func @transform_3(%arg0: i32) -> (i32, i32) {
    %c0_i32 = arith.constant 0 : i32
    %c0_i32_0 = arith.constant 0 : i32
    %c0_i32_1 = arith.constant 0 : i32
    return %c0_i32, %c0_i32_0 : i32, i32
  }
  func.func @transform_4(%arg0: i32) -> (i32, i32) {
    %c0_i32 = arith.constant 0 : i32
    %c0_i32_0 = arith.constant 0 : i32
    %c0_i32_1 = arith.constant 0 : i32
    return %c0_i32, %c0_i32_0 : i32, i32
  }
  func.func @transform_5(%arg0: i32) -> (i32, i32) {
    %c0_i32 = arith.constant 0 : i32
    %c0_i32_0 = arith.constant 0 : i32
    %c0_i32_1 = arith.constant 0 : i32
    return %c0_i32, %c0_i32_0 : i32, i32
  }
  func.func @transform_6(%arg0: i32) -> (i32, i32) {
    %c0_i32 = arith.constant 0 : i32
    %c0_i32_0 = arith.constant 0 : i32
    %c0_i32_1 = arith.constant 0 : i32
    return %c0_i32, %c0_i32_0 : i32, i32
  }
  func.func @transform_7(%arg0: i32) -> (i32, i32) {
    %c0_i32 = arith.constant 0 : i32
    %c0_i32_0 = arith.constant 0 : i32
    %c0_i32_1 = arith.constant 0 : i32
    return %c0_i32, %c0_i32_0 : i32, i32
  }
  func.func @transform_8(%arg0: i32) -> (i32, i32) {
    %c0_i32 = arith.constant 0 : i32
    %c0_i32_0 = arith.constant 0 : i32
    %c0_i32_1 = arith.constant 0 : i32
    return %c0_i32, %c0_i32_0 : i32, i32
  }
  func.func @transform_9(%arg0: i32) -> (i32, i32) {
    %c0_i32 = arith.constant 0 : i32
    %c0_i32_0 = arith.constant 0 : i32
    %c0_i32_1 = arith.constant 0 : i32
    return %c0_i32, %c0_i32_0 : i32, i32
  }
  func.func @transform_10(%arg0: i32) -> (i32, i32) {
    %c0_i32 = arith.constant 0 : i32
    %c0_i32_0 = arith.constant 0 : i32
    %c0_i32_1 = arith.constant 0 : i32
    return %c0_i32, %c0_i32_0 : i32, i32
  }
  func.func @transform_11(%arg0: i32) -> (i32, i32) {
    %c0_i32 = arith.constant 0 : i32
    %c0_i32_0 = arith.constant 0 : i32
    %c0_i32_1 = arith.constant 0 : i32
    return %c0_i32, %c0_i32_0 : i32, i32
  }
  func.func @transform_12(%arg0: i32) -> (i32, i32) {
    %c0_i32 = arith.constant 0 : i32
    %c0_i32_0 = arith.constant 0 : i32
    %c0_i32_1 = arith.constant 0 : i32
    return %c0_i32, %c0_i32_0 : i32, i32
  }
  func.func @transform_13(%arg0: i32) -> (i32, i32) {
    %c0_i32 = arith.constant 0 : i32
    %c0_i32_0 = arith.constant 0 : i32
    %c0_i32_1 = arith.constant 0 : i32
    return %c0_i32, %c0_i32_0 : i32, i32
  }
  func.func @transform_14(%arg0: i32) -> (i32, i32) {
    %c0_i32 = arith.constant 0 : i32
    %c0_i32_0 = arith.constant 0 : i32
    %c0_i32_1 = arith.constant 0 : i32
    return %c0_i32, %c0_i32_0 : i32, i32
  }
  func.func @transform_15(%arg0: i32) -> (i32, i32) {
    %c0_i32 = arith.constant 0 : i32
    %c0_i32_0 = arith.constant 0 : i32
    %c0_i32_1 = arith.constant 0 : i32
    return %c0_i32, %c0_i32_0 : i32, i32
  }
  func.func @transform_16(%arg0: i32) -> (i32, i32, i32) {
    %c0_i32 = arith.constant 0 : i32
    %c0_i32_0 = arith.constant 0 : i32
    %c0_i32_1 = arith.constant 0 : i32
    return %arg0, %c0_i32, %c0_i32_0 : i32, i32, i32
  }
}

</mosaic_0001>

<llo_original>
// kernel: tpu_custom_call.1
$region0: #{tpu_custom_call.1}
  #allocation0 [shape = 'u32[]', space=smem, size = 0x4, offset = 0x4, fixed_abs, tag = 'smem constant byte address 0x4 - core index']
  #allocation1 [shape = 'u32[144,128]{1,0:T(1,128)}', space=vmem, size = 0x12000, scoped, tag = 'internal scratch']
  #allocation2 [shape = 'f32[1,32]{1,0:T(1,128)}', space=vmem, size = 0x200, scoped, tag = 'scratch operand']
  %s0 = inlined_call_operand.vmem [shape: f32[4,9,24], index: 0, kind: input, shape index: {}]
  %s1 = inlined_call_operand.vmem [shape: f32[4,8,8], index: 1, kind: input, shape index: {}]
  %s2 = inlined_call_operand.vmem [shape: f32[1,32], index: 2, kind: input, shape index: {}]
  %s3 = inlined_call_operand.vmem [shape: f32[24,128], index: 3, kind: input, shape index: {}]
  %s4 = inlined_call_operand.vmem [shape: f32[32,128], index: 4, kind: input, shape index: {}]
  %s5 = inlined_call_operand.vmem [shape: f32[1,128], index: 5, kind: input, shape index: {}]
  %s6 = inlined_call_operand.hbm [shape: f32[24,96], index: 6, kind: input, shape index: {}]
  %s7 = inlined_call_operand.vmem [shape: f32[8,96], index: 7, kind: input, shape index: {}]
  %s8 = inlined_call_operand.vmem [shape: f32[1,96], index: 8, kind: input, shape index: {}]
  %s9 = inlined_call_operand.vmem [shape: f32[32,32], index: 9, kind: input, shape index: {}]
  %s10 = inlined_call_operand.vmem [shape: f32[1,32], index: 10, kind: input, shape index: {}]
  %s11 = inlined_call_operand.vmem [shape: f32[32,64], index: 11, kind: input, shape index: {}]
  %s12 = inlined_call_operand.vmem [shape: f32[1,64], index: 12, kind: input, shape index: {}]
  %s13 = inlined_call_operand.vmem [shape: f32[64,32], index: 13, kind: input, shape index: {}]
  %s14 = inlined_call_operand.vmem [shape: f32[1,32], index: 14, kind: input, shape index: {}]
  %s15 = inlined_call_operand.vmem [shape: f32[8,32], index: 15, kind: input, shape index: {}]
  %s16 = inlined_call_operand.hbm [shape: f32[4,1,32], index: 16, kind: output, shape index: {}]
  %s17 = sld [smem:[#allocation0]]
  $region105: #{tpu_custom_call.1} parent=0
    _
  %s19 = ssub.s32 1, %s17
  %s20 = scalar_select 0, %s19, %s17
  $region1: #{tpu_custom_call.1} parent=0
    #allocation3 [shape = 'u8[12288]{0}', space=vmem, size = 0x3000, scoped, tag = 'input window, operand 6, single buffered']
    #allocation4 [shape = 's32[2]{0}', space=sflag, size = 0x8, scoped, tag = 'scoped memory for tpu_custom_call.1']
    #allocation5 [shape = 's32[2]{0}', space=sflag, size = 0x8, scoped, tag = 'scoped memory for tpu_custom_call.1']
    #allocation6 [shape = 'u8[1024]{0}', space=vmem, size = 0x400, scoped, tag = 'output window, operand 0']
    %21 = vsyncpa [#allocation4], 0
    %22 = vsyncpa [#allocation5], 0
    %s23 = scalar_lea.sflag [#allocation5], 1
    %24 = vsyncpa %s23, 0
    loop: start=0, step=1, limit=6
    $region2: #{tpu_custom_call.1} parent=1 // loop_pre_header
      _
    $region3: #{tpu_custom_call.1} parent=1 // loop_header
      %s26 = sphi 0, %s30
      %p27 = scmp.ge.s32.totalorder %s26, 6
      %s36 = sphi 0, %s38
      %s39 = sphi 0, %s36
      %s40 = sphi 0, %s39
      %s56 = sphi 0, %s40
      %s62 = sphi 0, %s64
      %s65 = sphi 0, %s62
      %s66 = sphi 0, %s65
      %s82 = sphi 0, %s66
      %s86 = sphi 0, %s86
      %s88 = sphi 0, %s86
      %s89 = sphi 0, %s88
      %s103 = sphi 0, %s89
      %s107 = sphi 0, %s107
      %s109 = sphi 0, %s107
      %s110 = sphi 0, %s109
      %s124 = sphi 0, %s110
      %s128 = sphi 0, %s128
      %s130 = sphi 0, %s128
      %s131 = sphi 0, %s130
      %s145 = sphi 0, %s131
      %s149 = sphi 0, %s149
      %s151 = sphi 0, %s149
      %s152 = sphi 0, %s151
      %s166 = sphi 0, %s152
      %s170 = sphi 0, %s170
      %s172 = sphi 0, %s170
      %s173 = sphi 0, %s172
      %s187 = sphi 0, %s173
      %s191 = sphi 0, %s191
      %s193 = sphi 0, %s191
      %s194 = sphi 0, %s193
      %s208 = sphi 0, %s194
      %s212 = sphi 0, %s212
      %s214 = sphi 0, %s212
      %s215 = sphi 0, %s214
      %s229 = sphi 0, %s215
      %s233 = sphi 0, %s233
      %s235 = sphi 0, %s233
      %s236 = sphi 0, %s235
      %s250 = sphi 0, %s236
      %s254 = sphi 0, %s254
      %s256 = sphi 0, %s254
      %s257 = sphi 0, %s256
      %s271 = sphi 0, %s257
      %s275 = sphi 0, %s275
      %s277 = sphi 0, %s275
      %s278 = sphi 0, %s277
      %s292 = sphi 0, %s278
      %s296 = sphi 0, %s296
      %s298 = sphi 0, %s296
      %s299 = sphi 0, %s298
      %s313 = sphi 0, %s299
      %s317 = sphi 0, %s317
      %s319 = sphi 0, %s317
      %s320 = sphi 0, %s319
      %s334 = sphi 0, %s320
      %s338 = sphi 0, %s338
      %s340 = sphi 0, %s338
      %s341 = sphi 0, %s340
      %s355 = sphi 0, %s341
      %s359 = sphi 0, %s359
      %s361 = sphi 0, %s359
      %s362 = sphi 0, %s361
      %s376 = sphi 0, %s362
      %s382 = sphi 0, %s384
      %s385 = sphi 0, %s382
      %s386 = sphi 0, %s385
      %s402 = sphi 0, %s386
    $region4: #{tpu_custom_call.1} parent=1 // loop_header_branch
      %29 = sbr.rel (%p27) target = $region8
    $region5: #{tpu_custom_call.1} parent=1 // loop_body
      %s31 = ssub.s32 %s26, 1
      %s32 = ssub.s32 %s26, 2
      %s33 = sadd.s32 %s26, 1
      %s34 = ssub.s32 %s26, %s33
      %p35 = scmp.eq.s32.totalorder %s34, 0
      %s37 = sadd.s32 %s36, 1
      %s38 = scalar_select %p35, %s36, %s37
      %p41 = pneg %p35
      %p42 = scmp.eq.s32.totalorder %s26, 3
      %p43 = por %p41, %p42
      %p44 = scmp.ne.s32.totalorder %s36, %s39
      %p45 = scmp.eq.s32.totalorder %s26, 0
      %p46 = por %p44, %p45
      %p47 = scmp.ne.s32.totalorder %s36, %s39
      %p48 = scmp.eq.s32.totalorder %s31, 3
      %p49 = por %p47, %p48
      %p50 = scmp.ne.s32.totalorder %s39, %s40
      %p51 = scmp.eq.s32.totalorder %s31, 0
      %p52 = por %p50, %p51
      %p53 = scmp.ne.s32.totalorder %s39, %s40
      %p54 = scmp.eq.s32.totalorder %s32, 3
      %p55 = por %p53, %p54
      %p57 = scmp.ne.s32.totalorder %s40, %s56
      %p58 = scmp.eq.s32.totalorder %s32, 0
      %p59 = por %p57, %p58
      %s60 = ssub.s32 %s26, %s33
      %p61 = scmp.eq.s32.totalorder %s60, 0
      %s63 = sadd.s32 %s62, 1
      %s64 = scalar_select %p61, %s62, %s63
      %p67 = pneg %p61
      %p68 = scmp.eq.s32.totalorder %s26, 3
      %p69 = por %p67, %p68
      %p70 = scmp.ne.s32.totalorder %s62, %s65
      %p71 = scmp.eq.s32.totalorder %s26, 0
      %p72 = por %p70, %p71
      %p73 = scmp.ne.s32.totalorder %s62, %s65
      %p74 = scmp.eq.s32.totalorder %s31, 3
      %p75 = por %p73, %p74
      %p76 = scmp.ne.s32.totalorder %s65, %s66
      %p77 = scmp.eq.s32.totalorder %s31, 0
      %p78 = por %p76, %p77
      %p79 = scmp.ne.s32.totalorder %s65, %s66
      %p80 = scmp.eq.s32.totalorder %s32, 3
      %p81 = por %p79, %p80
      %p83 = scmp.ne.s32.totalorder %s66, %s82
      %p84 = scmp.eq.s32.totalorder %s32, 0
      %p85 = por %p83, %p84
      %s87 = sadd.s32 %s86, 1
      %p90 = scmp.eq.s32.totalorder %s26, 3
      %p91 = scmp.ne.s32.totalorder %s86, %s88
      %p92 = scmp.eq.s32.totalorder %s26, 0
      %p93 = por %p91, %p92
      %p94 = scmp.ne.s32.totalorder %s86, %s88
      %p95 = scmp.eq.s32.totalorder %s31, 3
      %p96 = por %p94, %p95
      %p97 = scmp.ne.s32.totalorder %s88, %s89
      %p98 = scmp.eq.s32.totalorder %s31, 0
      %p99 = por %p97, %p98
      %p100 = scmp.ne.s32.totalorder %s88, %s89
      %p101 = scmp.eq.s32.totalorder %s32, 3
      %p102 = por %p100, %p101
      %p104 = scmp.ne.s32.totalorder %s89, %s103
      %p105 = scmp.eq.s32.totalorder %s32, 0
      %p106 = por %p104, %p105
      %s108 = sadd.s32 %s107, 1
      %p111 = scmp.eq.s32.totalorder %s26, 3
      %p112 = scmp.ne.s32.totalorder %s107, %s109
      %p113 = scmp.eq.s32.totalorder %s26, 0
      %p114 = por %p112, %p113
      %p115 = scmp.ne.s32.totalorder %s107, %s109
      %p116 = scmp.eq.s32.totalorder %s31, 3
      %p117 = por %p115, %p116
      %p118 = scmp.ne.s32.totalorder %s109, %s110
      %p119 = scmp.eq.s32.totalorder %s31, 0
      %p120 = por %p118, %p119
      %p121 = scmp.ne.s32.totalorder %s109, %s110
      %p122 = scmp.eq.s32.totalorder %s32, 3
      %p123 = por %p121, %p122
      %p125 = scmp.ne.s32.totalorder %s110, %s124
      %p126 = scmp.eq.s32.totalorder %s32, 0
      %p127 = por %p125, %p126
      %s129 = sadd.s32 %s128, 1
      %p132 = scmp.eq.s32.totalorder %s26, 3
      %p133 = scmp.ne.s32.totalorder %s128, %s130
      %p134 = scmp.eq.s32.totalorder %s26, 0
      %p135 = por %p133, %p134
      %p136 = scmp.ne.s32.totalorder %s128, %s130
      %p137 = scmp.eq.s32.totalorder %s31, 3
      %p138 = por %p136, %p137
      %p139 = scmp.ne.s32.totalorder %s130, %s131
      %p140 = scmp.eq.s32.totalorder %s31, 0
      %p141 = por %p139, %p140
      %p142 = scmp.ne.s32.totalorder %s130, %s131
      %p143 = scmp.eq.s32.totalorder %s32, 3
      %p144 = por %p142, %p143
      %p146 = scmp.ne.s32.totalorder %s131, %s145
      %p147 = scmp.eq.s32.totalorder %s32, 0
      %p148 = por %p146, %p147
      %s150 = sadd.s32 %s149, 1
      %p153 = scmp.eq.s32.totalorder %s26, 3
      %p154 = scmp.ne.s32.totalorder %s149, %s151
      %p155 = scmp.eq.s32.totalorder %s26, 0
      %p156 = por %p154, %p155
      %p157 = scmp.ne.s32.totalorder %s149, %s151
      %p158 = scmp.eq.s32.totalorder %s31, 3
      %p159 = por %p157, %p158
      %p160 = scmp.ne.s32.totalorder %s151, %s152
      %p161 = scmp.eq.s32.totalorder %s31, 0
      %p162 = por %p160, %p161
      %p163 = scmp.ne.s32.totalorder %s151, %s152
      %p164 = scmp.eq.s32.totalorder %s32, 3
      %p165 = por %p163, %p164
      %p167 = scmp.ne.s32.totalorder %s152, %s166
      %p168 = scmp.eq.s32.totalorder %s32, 0
      %p169 = por %p167, %p168
      %s171 = sadd.s32 %s170, 1
      %p174 = scmp.eq.s32.totalorder %s26, 3
      %p175 = scmp.ne.s32.totalorder %s170, %s172
      %p176 = scmp.eq.s32.totalorder %s26, 0
      %p177 = por %p175, %p176
      %p178 = scmp.ne.s32.totalorder %s170, %s172
      %p179 = scmp.eq.s32.totalorder %s31, 3
      %p180 = por %p178, %p179
      %p181 = scmp.ne.s32.totalorder %s172, %s173
      %p182 = scmp.eq.s32.totalorder %s31, 0
      %p183 = por %p181, %p182
      %p184 = scmp.ne.s32.totalorder %s172, %s173
      %p185 = scmp.eq.s32.totalorder %s32, 3
      %p186 = por %p184, %p185
      %p188 = scmp.ne.s32.totalorder %s173, %s187
      %p189 = scmp.eq.s32.totalorder %s32, 0
      %p190 = por %p188, %p189
      %s192 = sadd.s32 %s191, 1
      %p195 = scmp.eq.s32.totalorder %s26, 3
      %p196 = scmp.ne.s32.totalorder %s191, %s193
      %p197 = scmp.eq.s32.totalorder %s26, 0
      %p198 = por %p196, %p197
      %p199 = scmp.ne.s32.totalorder %s191, %s193
      %p200 = scmp.eq.s32.totalorder %s31, 3
      %p201 = por %p199, %p200
      %p202 = scmp.ne.s32.totalorder %s193, %s194
      %p203 = scmp.eq.s32.totalorder %s31, 0
      %p204 = por %p202, %p203
      %p205 = scmp.ne.s32.totalorder %s193, %s194
      %p206 = scmp.eq.s32.totalorder %s32, 3
      %p207 = por %p205, %p206
      %p209 = scmp.ne.s32.totalorder %s194, %s208
      %p210 = scmp.eq.s32.totalorder %s32, 0
      %p211 = por %p209, %p210
      %s213 = sadd.s32 %s212, 1
      %p216 = scmp.eq.s32.totalorder %s26, 3
      %p217 = scmp.ne.s32.totalorder %s212, %s214
      %p218 = scmp.eq.s32.totalorder %s26, 0
      %p219 = por %p217, %p218
      %p220 = scmp.ne.s32.totalorder %s212, %s214
      %p221 = scmp.eq.s32.totalorder %s31, 3
      %p222 = por %p220, %p221
      %p223 = scmp.ne.s32.totalorder %s214, %s215
      %p224 = scmp.eq.s32.totalorder %s31, 0
      %p225 = por %p223, %p224
      %p226 = scmp.ne.s32.totalorder %s214, %s215
      %p227 = scmp.eq.s32.totalorder %s32, 3
      %p228 = por %p226, %p227
      %p230 = scmp.ne.s32.totalorder %s215, %s229
      %p231 = scmp.eq.s32.totalorder %s32, 0
      %p232 = por %p230, %p231
      %s234 = sadd.s32 %s233, 1
      %p237 = scmp.eq.s32.totalorder %s26, 3
      %p238 = scmp.ne.s32.totalorder %s233, %s235
      %p239 = scmp.eq.s32.totalorder %s26, 0
      %p240 = por %p238, %p239
      %p241 = scmp.ne.s32.totalorder %s233, %s235
      %p242 = scmp.eq.s32.totalorder %s31, 3
      %p243 = por %p241, %p242
      %p244 = scmp.ne.s32.totalorder %s235, %s236
      %p245 = scmp.eq.s32.totalorder %s31, 0
      %p246 = por %p244, %p245
      %p247 = scmp.ne.s32.totalorder %s235, %s236
      %p248 = scmp.eq.s32.totalorder %s32, 3
      %p249 = por %p247, %p248
      %p251 = scmp.ne.s32.totalorder %s236, %s250
      %p252 = scmp.eq.s32.totalorder %s32, 0
      %p253 = por %p251, %p252
      %s255 = sadd.s32 %s254, 1
      %p258 = scmp.eq.s32.totalorder %s26, 3
      %p259 = scmp.ne.s32.totalorder %s254, %s256
      %p260 = scmp.eq.s32.totalorder %s26, 0
      %p261 = por %p259, %p260
      %p262 = scmp.ne.s32.totalorder %s254, %s256
      %p263 = scmp.eq.s32.totalorder %s31, 3
      %p264 = por %p262, %p263
      %p265 = scmp.ne.s32.totalorder %s256, %s257
      %p266 = scmp.eq.s32.totalorder %s31, 0
      %p267 = por %p265, %p266
      %p268 = scmp.ne.s32.totalorder %s256, %s257
      %p269 = scmp.eq.s32.totalorder %s32, 3
      %p270 = por %p268, %p269
      %p272 = scmp.ne.s32.totalorder %s257, %s271
      %p273 = scmp.eq.s32.totalorder %s32, 0
      %p274 = por %p272, %p273
      %s276 = sadd.s32 %s275, 1
      %p279 = scmp.eq.s32.totalorder %s26, 3
      %p280 = scmp.ne.s32.totalorder %s275, %s277
      %p281 = scmp.eq.s32.totalorder %s26, 0
      %p282 = por %p280, %p281
      %p283 = scmp.ne.s32.totalorder %s275, %s277
      %p284 = scmp.eq.s32.totalorder %s31, 3
      %p285 = por %p283, %p284
      %p286 = scmp.ne.s32.totalorder %s277, %s278
      %p287 = scmp.eq.s32.totalorder %s31, 0
      %p288 = por %p286, %p287
      %p289 = scmp.ne.s32.totalorder %s277, %s278
      %p290 = scmp.eq.s32.totalorder %s32, 3
      %p291 = por %p289, %p290
      %p293 = scmp.ne.s32.totalorder %s278, %s292
      %p294 = scmp.eq.s32.totalorder %s32, 0
      %p295 = por %p293, %p294
      %s297 = sadd.s32 %s296, 1
      %p300 = scmp.eq.s32.totalorder %s26, 3
      %p301 = scmp.ne.s32.totalorder %s296, %s298
      %p302 = scmp.eq.s32.totalorder %s26, 0
      %p303 = por %p301, %p302
      %p304 = scmp.ne.s32.totalorder %s296, %s298
      %p305 = scmp.eq.s32.totalorder %s31, 3
      %p306 = por %p304, %p305
      %p307 = scmp.ne.s32.totalorder %s298, %s299
      %p308 = scmp.eq.s32.totalorder %s31, 0
      %p309 = por %p307, %p308
      %p310 = scmp.ne.s32.totalorder %s298, %s299
      %p311 = scmp.eq.s32.totalorder %s32, 3
      %p312 = por %p310, %p311
      %p314 = scmp.ne.s32.totalorder %s299, %s313
      %p315 = scmp.eq.s32.totalorder %s32, 0
      %p316 = por %p314, %p315
      %s318 = sadd.s32 %s317, 1
      %p321 = scmp.eq.s32.totalorder %s26, 3
      %p322 = scmp.ne.s32.totalorder %s317, %s319
      %p323 = scmp.eq.s32.totalorder %s26, 0
      %p324 = por %p322, %p323
      %p325 = scmp.ne.s32.totalorder %s317, %s319
      %p326 = scmp.eq.s32.totalorder %s31, 3
      %p327 = por %p325, %p326
      %p328 = scmp.ne.s32.totalorder %s319, %s320
      %p329 = scmp.eq.s32.totalorder %s31, 0
      %p330 = por %p328, %p329
      %p331 = scmp.ne.s32.totalorder %s319, %s320
      %p332 = scmp.eq.s32.totalorder %s32, 3
      %p333 = por %p331, %p332
      %p335 = scmp.ne.s32.totalorder %s320, %s334
      %p336 = scmp.eq.s32.totalorder %s32, 0
      %p337 = por %p335, %p336
      %s339 = sadd.s32 %s338, 1
      %p342 = scmp.eq.s32.totalorder %s26, 3
      %p343 = scmp.ne.s32.totalorder %s338, %s340
      %p344 = scmp.eq.s32.totalorder %s26, 0
      %p345 = por %p343, %p344
      %p346 = scmp.ne.s32.totalorder %s338, %s340
      %p347 = scmp.eq.s32.totalorder %s31, 3
      %p348 = por %p346, %p347
      %p349 = scmp.ne.s32.totalorder %s340, %s341
      %p350 = scmp.eq.s32.totalorder %s31, 0
      %p351 = por %p349, %p350
      %p352 = scmp.ne.s32.totalorder %s340, %s341
      %p353 = scmp.eq.s32.totalorder %s32, 3
      %p354 = por %p352, %p353
      %p356 = scmp.ne.s32.totalorder %s341, %s355
      %p357 = scmp.eq.s32.totalorder %s32, 0
      %p358 = por %p356, %p357
      %s360 = sadd.s32 %s359, 1
      %p363 = scmp.eq.s32.totalorder %s26, 3
      %p364 = scmp.ne.s32.totalorder %s359, %s361
      %p365 = scmp.eq.s32.totalorder %s26, 0
      %p366 = por %p364, %p365
      %p367 = scmp.ne.s32.totalorder %s359, %s361
      %p368 = scmp.eq.s32.totalorder %s31, 3
      %p369 = por %p367, %p368
      %p370 = scmp.ne.s32.totalorder %s361, %s362
      %p371 = scmp.eq.s32.totalorder %s31, 0
      %p372 = por %p370, %p371
      %p373 = scmp.ne.s32.totalorder %s361, %s362
      %p374 = scmp.eq.s32.totalorder %s32, 3
      %p375 = por %p373, %p374
      %p377 = scmp.ne.s32.totalorder %s362, %s376
      %p378 = scmp.eq.s32.totalorder %s32, 0
      %p379 = por %p377, %p378
      %s380 = ssub.s32 %s26, %s33
      %p381 = scmp.eq.s32.totalorder %s380, 0
      %s383 = sadd.s32 %s382, 1
      %s384 = scalar_select %p381, %s382, %s383
      %p387 = pneg %p381
      %p388 = scmp.eq.s32.totalorder %s26, 3
      %p389 = por %p387, %p388
      %p390 = scmp.ne.s32.totalorder %s382, %s385
      %p391 = scmp.eq.s32.totalorder %s26, 0
      %p392 = por %p390, %p391
      %p393 = scmp.ne.s32.totalorder %s382, %s385
      %p394 = scmp.eq.s32.totalorder %s31, 3
      %p395 = por %p393, %p394
      %p396 = scmp.ne.s32.totalorder %s385, %s386
      %p397 = scmp.eq.s32.totalorder %s31, 0
      %p398 = por %p396, %p397
      %p399 = scmp.ne.s32.totalorder %s385, %s386
      %p400 = scmp.eq.s32.totalorder %s32, 3
      %p401 = por %p399, %p400
      %p403 = scmp.ne.s32.totalorder %s386, %s402
      %p404 = scmp.eq.s32.totalorder %s32, 0
      %p405 = por %p403, %p404
      %p406 = scmp.le.s32.totalorder 1, %s26
      %p407 = scmp.lt.s32.totalorder %s26, 5
      %p408 = pnand %p406, %p407
      %p409 = pneg %p408
      // Predicated region
      $region9: #{tpu_custom_call.1} parent=5 // pred_check
        _
      $region10: #{tpu_custom_call.1} parent=5 // pred_check_branch
        %411 = sbr.rel (%p408) target = $region12
      $region11: #{tpu_custom_call.1} parent=5 // pred_region
        %s412 = ssub.s32 %s26, 1
        // Predicated region
        $region13: #{tpu_custom_call.1} parent=11 // pred_check
          %p413 = pneg %p99
        $region14: #{tpu_custom_call.1} parent=11 // pred_check_branch
          %415 = sbr.rel (%p413) target = $region16
        $region15: #{tpu_custom_call.1} parent=11 // pred_region
          _
        $region16: #{tpu_custom_call.1} parent=11 // pred_fallthru
          _
        // Predicated region
        $region17: #{tpu_custom_call.1} parent=11 // pred_check
          %p416 = pneg %p120
        $region18: #{tpu_custom_call.1} parent=11 // pred_check_branch
          %418 = sbr.rel (%p416) target = $region20
        $region19: #{tpu_custom_call.1} parent=11 // pred_region
          _
        $region20: #{tpu_custom_call.1} parent=11 // pred_fallthru
          _
        // Predicated region
        $region21: #{tpu_custom_call.1} parent=11 // pred_check
          %p419 = pneg %p141
        $region22: #{tpu_custom_call.1} parent=11 // pred_check_branch
          %421 = sbr.rel (%p419) target = $region24
        $region23: #{tpu_custom_call.1} parent=11 // pred_region
          _
        $region24: #{tpu_custom_call.1} parent=11 // pred_fallthru
          _
        // Predicated region
        $region25: #{tpu_custom_call.1} parent=11 // pred_check
          %p422 = pneg %p162
        $region26: #{tpu_custom_call.1} parent=11 // pred_check_branch
          %424 = sbr.rel (%p422) target = $region28
        $region27: #{tpu_custom_call.1} parent=11 // pred_region
          _
        $region28: #{tpu_custom_call.1} parent=11 // pred_fallthru
          _
        // Predicated region
        $region29: #{tpu_custom_call.1} parent=11 // pred_check
          %p425 = pneg %p183
        $region30: #{tpu_custom_call.1} parent=11 // pred_check_branch
          %427 = sbr.rel (%p425) target = $region32
        $region31: #{tpu_custom_call.1} parent=11 // pred_region
          %s429 = ssub.s32 384, 384
          %430 = vsyncadd [#allocation4], %s429
          %s431 = sshll.u32 [#allocation3], 4
          %s432 = int_to_ptr.vmem [resolvable:$true] %s431
          %437 = dma.hbm_to_vmem [thread:$0]  %s6, 384, %s432, [#allocation4], 128, 128, 8
        $region32: #{tpu_custom_call.1} parent=11 // pred_fallthru
          _
        // Predicated region
        $region33: #{tpu_custom_call.1} parent=11 // pred_check
          %p438 = pneg %p204
        $region34: #{tpu_custom_call.1} parent=11 // pred_check_branch
          %440 = sbr.rel (%p438) target = $region36
        $region35: #{tpu_custom_call.1} parent=11 // pred_region
          _
        $region36: #{tpu_custom_call.1} parent=11 // pred_fallthru
          _
        // Predicated region
        $region37: #{tpu_custom_call.1} parent=11 // pred_check
          %p441 = pneg %p225
        $region38: #{tpu_custom_call.1} parent=11 // pred_check_branch
          %443 = sbr.rel (%p441) target = $region40
        $region39: #{tpu_custom_call.1} parent=11 // pred_region
          _
        $region40: #{tpu_custom_call.1} parent=11 // pred_fallthru
          _
        // Predicated region
        $region41: #{tpu_custom_call.1} parent=11 // pred_check
          %p444 = pneg %p246
        $region42: #{tpu_custom_call.1} parent=11 // pred_check_branch
          %446 = sbr.rel (%p444) target = $region44
        $region43: #{tpu_custom_call.1} parent=11 // pred_region
          _
        $region44: #{tpu_custom_call.1} parent=11 // pred_fallthru
          _
        // Predicated region
        $region45: #{tpu_custom_call.1} parent=11 // pred_check
          %p447 = pneg %p267
        $region46: #{tpu_custom_call.1} parent=11 // pred_check_branch
          %449 = sbr.rel (%p447) target = $region48
        $region47: #{tpu_custom_call.1} parent=11 // pred_region
          _
        $region48: #{tpu_custom_call.1} parent=11 // pred_fallthru
          _
        // Predicated region
        $region49: #{tpu_custom_call.1} parent=11 // pred_check
          %p450 = pneg %p288
        $region50: #{tpu_custom_call.1} parent=11 // pred_check_branch
          %452 = sbr.rel (%p450) target = $region52
        $region51: #{tpu_custom_call.1} parent=11 // pred_region
          _
        $region52: #{tpu_custom_call.1} parent=11 // pred_fallthru
          _
        // Predicated region
        $region53: #{tpu_custom_call.1} parent=11 // pred_check
          %p453 = pneg %p309
        $region54: #{tpu_custom_call.1} parent=11 // pred_check_branch
          %455 = sbr.rel (%p453) target = $region56
        $region55: #{tpu_custom_call.1} parent=11 // pred_region
          _
        $region56: #{tpu_custom_call.1} parent=11 // pred_fallthru
          _
        // Predicated region
        $region57: #{tpu_custom_call.1} parent=11 // pred_check
          %p456 = pneg %p330
        $region58: #{tpu_custom_call.1} parent=11 // pred_check_branch
          %458 = sbr.rel (%p456) target = $region60
        $region59: #{tpu_custom_call.1} parent=11 // pred_region
          _
        $region60: #{tpu_custom_call.1} parent=11 // pred_fallthru
          _
        // Predicated region
        $region61: #{tpu_custom_call.1} parent=11 // pred_check
          %p459 = pneg %p351
        $region62: #{tpu_custom_call.1} parent=11 // pred_check_branch
          %461 = sbr.rel (%p459) target = $region64
        $region63: #{tpu_custom_call.1} parent=11 // pred_region
          _
        $region64: #{tpu_custom_call.1} parent=11 // pred_fallthru
          _
        // Predicated region
        $region65: #{tpu_custom_call.1} parent=11 // pred_check
          %p462 = pneg %p372
        $region66: #{tpu_custom_call.1} parent=11 // pred_check_branch
          %464 = sbr.rel (%p462) target = $region68
        $region67: #{tpu_custom_call.1} parent=11 // pred_region
          _
        $region68: #{tpu_custom_call.1} parent=11 // pred_fallthru
          _
      $region12: #{tpu_custom_call.1} parent=5 // pred_fallthru
        _
      %p465 = scmp.lt.s32.totalorder %s26, 4
      // Predicated region
      $region69: #{tpu_custom_call.1} parent=5 // pred_check
        %p466 = pneg %p465
      $region70: #{tpu_custom_call.1} parent=5 // pred_check_branch
        %468 = sbr.rel (%p466) target = $region72
      $region71: #{tpu_custom_call.1} parent=5 // pred_region
        // Predicated region
        $region73: #{tpu_custom_call.1} parent=71 // pred_check
          %p469 = pneg %p46
        $region74: #{tpu_custom_call.1} parent=71 // pred_check_branch
          %471 = sbr.rel (%p469) target = $region76
        $region75: #{tpu_custom_call.1} parent=71 // pred_region
          %p472 = scmp.lt.s32.totalorder %s26, 3
          %s473 = scalar_select %p472, %s26, 3
          %s474 = smul.addr %s473, 2
          %s475 = smul.addr %s474, 8
          %s476 = scalar_lea.vmem %s0, %s475
        $region76: #{tpu_custom_call.1} parent=71 // pred_fallthru
          _
        // Predicated region
        $region77: #{tpu_custom_call.1} parent=71 // pred_check
          %p477 = pneg %p72
        $region78: #{tpu_custom_call.1} parent=71 // pred_check_branch
          %479 = sbr.rel (%p477) target = $region80
        $region79: #{tpu_custom_call.1} parent=71 // pred_region
          %p480 = scmp.lt.s32.totalorder %s26, 3
          %s481 = scalar_select %p480, %s26, 3
          %s482 = smul.addr %s481, 8
          %s483 = scalar_lea.vmem %s1, %s482
        $region80: #{tpu_custom_call.1} parent=71 // pred_fallthru
          _
      $region72: #{tpu_custom_call.1} parent=5 // pred_fallthru
        _
      %p484 = scmp.le.s32.totalorder 1, %s26
      %p485 = scmp.lt.s32.totalorder %s26, 5
      %p486 = pnand %p484, %p485
      %p487 = pneg %p486
      // Predicated region
      $region81: #{tpu_custom_call.1} parent=5 // pred_check
        _
      $region82: #{tpu_custom_call.1} parent=5 // pred_check_branch
        %489 = sbr.rel (%p486) target = $region84
      $region83: #{tpu_custom_call.1} parent=5 // pred_region
        %s490 = ssub.s32 %s26, 1
        // Predicated region
        $region85: #{tpu_custom_call.1} parent=83 // pred_check
          %p491 = pneg %p183
        $region86: #{tpu_custom_call.1} parent=83 // pred_check_branch
          %493 = sbr.rel (%p491) target = $region88
        $region87: #{tpu_custom_call.1} parent=83 // pred_region
          %494 = dma.done [#allocation4], 384
        $region88: #{tpu_custom_call.1} parent=83 // pred_fallthru
          _
        %p495 = scmp.lt.s32.totalorder %s31, 3
        %s496 = scalar_select %p495, %s31, 3
        %s497 = smul.addr %s496, 2
        %s498 = smul.addr %s497, 8
        %s499 = scalar_lea.vmem %s0, %s498
        %p500 = pneg %p52
        %p501 = pneg %p49
        %p502 = scmp.lt.s32.totalorder %s31, 3
        %s503 = scalar_select %p502, %s31, 3
        %s504 = smul.addr %s503, 8
        %s505 = scalar_lea.vmem %s1, %s504
        %p506 = pneg %p78
        %p507 = pneg %p75
        %p508 = pneg %p99
        %p509 = pneg %p96
        %p510 = pneg %p120
        %p511 = pneg %p117
        %p512 = pneg %p141
        %p513 = pneg %p138
        %p514 = pneg %p162
        %p515 = pneg %p159
        %p516 = pneg %p183
        %p517 = pneg %p180
        %p518 = pneg %p204
        %p519 = pneg %p201
        %p520 = pneg %p225
        %p521 = pneg %p222
        %p522 = pneg %p246
        %p523 = pneg %p243
        %p524 = pneg %p267
        %p525 = pneg %p264
        %p526 = pneg %p288
        %p527 = pneg %p285
        %p528 = pneg %p309
        %p529 = pneg %p306
        %p530 = pneg %p330
        %p531 = pneg %p327
        %p532 = pneg %p351
        %p533 = pneg %p348
        %p534 = pneg %p372
        %p535 = pneg %p369
        %p536 = pneg %p398
        %p537 = pneg %p395
        %s538 = sand.u32 %s385, 1
        %s539 = scalar_lea.sflag [#allocation5], %s538
        %s540 = sand.u32 %s385, 1
        %s541 = scalar_lea.vmem [#allocation6], %s540
        %p542 = scmp.lt.s32.totalorder %s31, 3
        %s543 = scalar_select %p542, %s31, 3
        %s544 = smul.addr %s543, 2
        %s545 = smul.addr %s544, 8
        %s546 = scalar_lea.vmem %s0, %s545
        %p547 = scmp.lt.s32.totalorder %s31, 3
        %s548 = scalar_select %p547, %s31, 3
        %s549 = smul.addr %s548, 8
        %s550 = scalar_lea.vmem %s1, %s549
        %p551 = scmp.eq.s32.totalorder %s31, 0
        // Predicated region
        $region89: #{tpu_custom_call.1} parent=83 // pred_check
          %p552 = pneg %p551
        $region90: #{tpu_custom_call.1} parent=83 // pred_check_branch
          %554 = sbr.rel (%p552) target = $region92
        $region91: #{tpu_custom_call.1} parent=83 // pred_region
          %v555 = vld [vmem:[%s2] sm:$0x1]
          %vm556 = vcmask 253952
          %557 = vst.msk [vmem:[#allocation2] sm:$0x1] %vm556, %v555
        $region92: #{tpu_custom_call.1} parent=83 // pred_fallthru
          _
        %v558 = vld [vmem:[%s546] sm:$0xff]
        %v559 = vld [vmem:[%s546 + $0x8] sm:$0x1]
        %v560 = vld [vmem:[%s550] sm:$0xff]
        %v561 = vld [vmem:[#allocation2] sm:$0x1]
        %v562 = vld [vmem:[%s3] sm:$0xff]
        %v563 = vld [vmem:[%s3 + $0x8] sm:$0xff]
        %v564 = vld [vmem:[%s3 + $0x10] sm:$0xff]
        %v565 = vld [vmem:[%s4] sm:$0xff]
        %v566 = vld [vmem:[%s4 + $0x8] sm:$0xff]
        %v567 = vld [vmem:[%s4 + $0x10] sm:$0xff]
        %v568 = vld [vmem:[%s4 + $0x18] sm:$0xff]
        %vm569 = vcmask 261120
        %v571 = vsel %vm569, %v561, 0
        %573 = vmatprep.subr.mxu0 0.0
        %574 = vmatpush1.msra.mxu0 0.0
        %575 = vmatprep.subr.mxu0 0.0
        %576 = vmatpush1.msra.mxu0 0.0
        %577 = vmatprep.subr.mxu0 0.0
        %578 = vmatpush1.msra.mxu0 0.0
        %579 = vmatprep.subr.mxu0 0.0
        %580 = vmatpush1.msra.mxu0 0.0
        %581 = vmatprep.subr.mxu0 0.0
        %582 = vmatpush1.msra.mxu0 0.0
        %583 = vmatprep.subr.mxu0 0.0
        %584 = vmatpush1.msra.mxu0 0.0
        %585 = vmatprep.subr.mxu0 0.0
        %586 = vmatpush1.msra.mxu0 0.0
        %587 = vmatprep.subr.mxu0 0.0
        %588 = vmatpush1.msra.mxu0 0.0
        %589 = vmatprep.subr.mxu0 0.0
        %590 = vmatpush1.msra.mxu0 0.0
        %591 = vmatprep.subr.mxu0 0.0
        %592 = vmatpush1.msra.mxu0 0.0
        %593 = vmatprep.subr.mxu0 0.0
        %594 = vmatpush1.msra.mxu0 0.0
        %595 = vmatprep.subr.mxu0 0.0
        %596 = vmatpush1.msra.mxu0 0.0
        %597 = vmatprep.subr.mxu0 0.0
        %598 = vmatpush1.msra.mxu0 %v568
        %599 = vmatprep.subr.mxu0 0.0
        %600 = vmatpush1.msra.mxu0 %v567
        %601 = vmatprep.subr.mxu0 0.0
        %602 = vmatpush1.msra.mxu0 %v566
        %603 = vmatprep.subr.mxu0 0.0
        %604 = vmatpush1.msra.mxu0 %v565
        %605 = vmatprep.subr.mxu0 0.0
        %606 = vmatpush2.msra.mxu0 0.0
        %607 = vmatprep.subr.mxu0 0.0
        %608 = vmatpush2.msra.mxu0 0.0
        %609 = vmatprep.subr.mxu0 0.0
        %610 = vmatpush2.msra.mxu0 0.0
        %611 = vmatprep.subr.mxu0 0.0
        %612 = vmatpush2.msra.mxu0 0.0
        %613 = vmatprep.subr.mxu0 0.0
        %614 = vmatpush2.msra.mxu0 0.0
        %615 = vmatprep.subr.mxu0 0.0
        %616 = vmatpush2.msra.mxu0 0.0
        %617 = vmatprep.subr.mxu0 0.0
        %618 = vmatpush2.msra.mxu0 0.0
        %619 = vmatprep.subr.mxu0 0.0
        %620 = vmatpush2.msra.mxu0 0.0
        %621 = vmatprep.subr.mxu0 0.0
        %622 = vmatpush2.msra.mxu0 0.0
        %623 = vmatprep.subr.mxu0 0.0
        %624 = vmatpush2.msra.mxu0 0.0
        %625 = vmatprep.subr.mxu0 0.0
        %626 = vmatpush2.msra.mxu0 0.0
        %627 = vmatprep.subr.mxu0 0.0
        %628 = vmatpush2.msra.mxu0 0.0
        %629 = vmatprep.subr.mxu0 0.0
        %630 = vmatpush2.msra.mxu0 0.0
        %631 = vmatprep.subr.mxu0 0.0
        %632 = vmatpush2.msra.mxu0 0.0
        %633 = vmatprep.subr.mxu0 0.0
        %634 = vmatpush2.msra.mxu0 0.0
        %635 = vmatprep.subr.mxu0 0.0
        %636 = vmatpush2.msra.mxu0 0.0
        %637 = vmatprep.mubr.f32.mxu0 0.0
        %638 = vmatmul.mubr.f32.gmra.mxu0 %v571
        %v639 = vpop.f32.mrf.mxu0
        %v640 = vadd.f32 0.0, %v639
        %v641 = vpop.f32.mrf.mxu0
        %642 = vdwg.mxu0
        %vm643 = vcmask 195584
        %v645 = vsel %vm643, %v558, 0
        %647 = vmatprep.subr.mxu0 0.0
        %648 = vmatpush1.msra.mxu0 0.0
        %649 = vmatprep.subr.mxu0 0.0
        %650 = vmatpush1.msra.mxu0 0.0
        %651 = vmatprep.subr.mxu0 0.0
        %652 = vmatpush1.msra.mxu0 0.0
        %653 = vmatprep.subr.mxu0 0.0
        %654 = vmatpush1.msra.mxu0 0.0
        %655 = vmatprep.subr.mxu0 0.0
        %656 = vmatpush1.msra.mxu0 0.0
        %657 = vmatprep.subr.mxu0 0.0
        %658 = vmatpush1.msra.mxu0 0.0
        %659 = vmatprep.subr.mxu0 0.0
        %660 = vmatpush1.msra.mxu0 0.0
        %661 = vmatprep.subr.mxu0 0.0
        %662 = vmatpush1.msra.mxu0 0.0
        %663 = vmatprep.subr.mxu0 0.0
        %664 = vmatpush1.msra.mxu0 0.0
        %665 = vmatprep.subr.mxu0 0.0
        %666 = vmatpush1.msra.mxu0 0.0
        %667 = vmatprep.subr.mxu0 0.0
        %668 = vmatpush1.msra.mxu0 0.0
        %669 = vmatprep.subr.mxu0 0.0
        %670 = vmatpush1.msra.mxu0 0.0
        %671 = vmatprep.subr.mxu0 0.0
        %672 = vmatpush1.msra.mxu0 0.0
        %673 = vmatprep.subr.mxu0 0.0
        %674 = vmatpush1.msra.mxu0 %v564
        %675 = vmatprep.subr.mxu0 0.0
        %676 = vmatpush1.msra.mxu0 %v563
        %677 = vmatprep.subr.mxu0 0.0
        %678 = vmatpush1.msra.mxu0 %v562
        %679 = vmatprep.subr.mxu0 0.0
        %680 = vmatpush2.msra.mxu0 0.0
        %681 = vmatprep.subr.mxu0 0.0
        %682 = vmatpush2.msra.mxu0 0.0
        %683 = vmatprep.subr.mxu0 0.0
        %684 = vmatpush2.msra.mxu0 0.0
        %685 = vmatprep.subr.mxu0 0.0
        %686 = vmatpush2.msra.mxu0 0.0
        %687 = vmatprep.subr.mxu0 0.0
        %688 = vmatpush2.msra.mxu0 0.0
        %689 = vmatprep.subr.mxu0 0.0
        %690 = vmatpush2.msra.mxu0 0.0
        %691 = vmatprep.subr.mxu0 0.0
        %692 = vmatpush2.msra.mxu0 0.0
        %693 = vmatprep.subr.mxu0 0.0
        %694 = vmatpush2.msra.mxu0 0.0
        %695 = vmatprep.subr.mxu0 0.0
        %696 = vmatpush2.msra.mxu0 0.0
        %697 = vmatprep.subr.mxu0 0.0
        %698 = vmatpush2.msra.mxu0 0.0
        %699 = vmatprep.subr.mxu0 0.0
        %700 = vmatpush2.msra.mxu0 0.0
        %701 = vmatprep.subr.mxu0 0.0
        %702 = vmatpush2.msra.mxu0 0.0
        %703 = vmatprep.subr.mxu0 0.0
        %704 = vmatpush2.msra.mxu0 0.0
        %705 = vmatprep.subr.mxu0 0.0
        %706 = vmatpush2.msra.mxu0 0.0
        %707 = vmatprep.subr.mxu0 0.0
        %708 = vmatpush2.msra.mxu0 0.0
        %709 = vmatprep.subr.mxu0 0.0
        %710 = vmatpush2.msra.mxu0 0.0
        %711 = vmatprep.mubr.f32.mxu0 0.0
        %712 = vmatmul.mubr.f32.gmra.mxu0 %v645
        %v713 = vpop.f32.mrf.mxu0
        %v714 = vadd.f32 %v640, %v713
        %v715 = vpop.f32.mrf.mxu0
        %716 = vdwg.mxu0
        %v717 = vld [vmem:[%s5] sm:$0x1]
        %v718 = vadd.f32 %v714, %v717
        %v719 = vxor.u32 %v718, 2147483648
        %v720 = vmul.f32 %v719, 1.442695
        %v721 = vpow.pop %v720
        %v722 = vadd.f32 %v721, 1.0
        %v723 = vrcp.pop %v722
        %v724 = vmul.f32 1.0, %v723
        %v725 = vtanh.pop %v718
        %v726 = vld [vmem:[#allocation3] sm:$0xff]
        %v727 = vld [vmem:[#allocation3 + $0x8] sm:$0xff]
        %v728 = vld [vmem:[#allocation3 + $0x10] sm:$0xff]
        %v729 = vld [vmem:[%s7] sm:$0xff]
        %vm730 = vcmask 64512
        %v732 = vsel %vm730, %v560, 0
        %734 = vmatprep.subr.mxu0 0.0
        %735 = vmatpush1.msra.mxu0 0.0
        %736 = vmatprep.subr.mxu0 0.0
        %737 = vmatpush1.msra.mxu0 0.0
        %738 = vmatprep.subr.mxu0 0.0
        %739 = vmatpush1.msra.mxu0 0.0
        %740 = vmatprep.subr.mxu0 0.0
        %741 = vmatpush1.msra.mxu0 0.0
        %742 = vmatprep.subr.mxu0 0.0
        %743 = vmatpush1.msra.mxu0 0.0
        %744 = vmatprep.subr.mxu0 0.0
        %745 = vmatpush1.msra.mxu0 0.0
        %746 = vmatprep.subr.mxu0 0.0
        %747 = vmatpush1.msra.mxu0 0.0
        %748 = vmatprep.subr.mxu0 0.0
        %749 = vmatpush1.msra.mxu0 0.0
        %750 = vmatprep.subr.mxu0 0.0
        %751 = vmatpush1.msra.mxu0 0.0
        %752 = vmatprep.subr.mxu0 0.0
        %753 = vmatpush1.msra.mxu0 0.0
        %754 = vmatprep.subr.mxu0 0.0
        %755 = vmatpush1.msra.mxu0 0.0
        %756 = vmatprep.subr.mxu0 0.0
        %757 = vmatpush1.msra.mxu0 0.0
        %758 = vmatprep.subr.mxu0 0.0
        %759 = vmatpush1.msra.mxu0 0.0
        %760 = vmatprep.subr.mxu0 0.0
        %761 = vmatpush1.msra.mxu0 0.0
        %762 = vmatprep.subr.mxu0 0.0
        %763 = vmatpush1.msra.mxu0 0.0
        %764 = vmatprep.subr.mxu0 0.0
        %765 = vmatpush1.msra.mxu0 %v729
        %766 = vmatprep.subr.mxu0 0.0
        %767 = vmatpush2.msra.mxu0 0.0
        %768 = vmatprep.subr.mxu0 0.0
        %769 = vmatpush2.msra.mxu0 0.0
        %770 = vmatprep.subr.mxu0 0.0
        %771 = vmatpush2.msra.mxu0 0.0
        %772 = vmatprep.subr.mxu0 0.0
        %773 = vmatpush2.msra.mxu0 0.0
        %774 = vmatprep.subr.mxu0 0.0
        %775 = vmatpush2.msra.mxu0 0.0
        %776 = vmatprep.subr.mxu0 0.0
        %777 = vmatpush2.msra.mxu0 0.0
        %778 = vmatprep.subr.mxu0 0.0
        %779 = vmatpush2.msra.mxu0 0.0
        %780 = vmatprep.subr.mxu0 0.0
        %781 = vmatpush2.msra.mxu0 0.0
        %782 = vmatprep.subr.mxu0 0.0
        %783 = vmatpush2.msra.mxu0 0.0
        %784 = vmatprep.subr.mxu0 0.0
        %785 = vmatpush2.msra.mxu0 0.0
        %786 = vmatprep.subr.mxu0 0.0
        %787 = vmatpush2.msra.mxu0 0.0
        %788 = vmatprep.subr.mxu0 0.0
        %789 = vmatpush2.msra.mxu0 0.0
        %790 = vmatprep.subr.mxu0 0.0
        %791 = vmatpush2.msra.mxu0 0.0
        %792 = vmatprep.subr.mxu0 0.0
        %793 = vmatpush2.msra.mxu0 0.0
        %794 = vmatprep.subr.mxu0 0.0
        %795 = vmatpush2.msra.mxu0 0.0
        %796 = vmatprep.subr.mxu0 0.0
        %797 = vmatpush2.msra.mxu0 0.0
        %798 = vmatprep.mubr.f32.mxu0 0.0
        %799 = vmatmul.mubr.f32.gmra.mxu0 %v732
        %v800 = vpop.f32.mrf.mxu0
        %v801 = vadd.f32 0.0, %v800
        %v802 = vpop.f32.mrf.mxu0
        %803 = vdwg.mxu0
        %vm805 = vcmask 1046528
        %v806 = vrot.slane %v558, 1
        %v807 = vrot.slane %v559, 1
        %v808 = vsel %vm805, %v806, %v807
        %v809 = vsel %vm643, %v808, 0
        %811 = vmatprep.subr.mxu0 0.0
        %812 = vmatpush1.msra.mxu0 0.0
        %813 = vmatprep.subr.mxu0 0.0
        %814 = vmatpush1.msra.mxu0 0.0
        %815 = vmatprep.subr.mxu0 0.0
        %816 = vmatpush1.msra.mxu0 0.0
        %817 = vmatprep.subr.mxu0 0.0
        %818 = vmatpush1.msra.mxu0 0.0
        %819 = vmatprep.subr.mxu0 0.0
        %820 = vmatpush1.msra.mxu0 0.0
        %821 = vmatprep.subr.mxu0 0.0
        %822 = vmatpush1.msra.mxu0 0.0
        %823 = vmatprep.subr.mxu0 0.0
        %824 = vmatpush1.msra.mxu0 0.0
        %825 = vmatprep.subr.mxu0 0.0
        %826 = vmatpush1.msra.mxu0 0.0
        %827 = vmatprep.subr.mxu0 0.0
        %828 = vmatpush1.msra.mxu0 0.0
        %829 = vmatprep.subr.mxu0 0.0
        %830 = vmatpush1.msra.mxu0 0.0
        %831 = vmatprep.subr.mxu0 0.0
        %832 = vmatpush1.msra.mxu0 0.0
        %833 = vmatprep.subr.mxu0 0.0
        %834 = vmatpush1.msra.mxu0 0.0
        %835 = vmatprep.subr.mxu0 0.0
        %836 = vmatpush1.msra.mxu0 0.0
        %837 = vmatprep.subr.mxu0 0.0
        %838 = vmatpush1.msra.mxu0 %v728
        %839 = vmatprep.subr.mxu0 0.0
        %840 = vmatpush1.msra.mxu0 %v727
        %841 = vmatprep.subr.mxu0 0.0
        %842 = vmatpush1.msra.mxu0 %v726
        %843 = vmatprep.subr.mxu0 0.0
        %844 = vmatpush2.msra.mxu0 0.0
        %845 = vmatprep.subr.mxu0 0.0
        %846 = vmatpush2.msra.mxu0 0.0
        %847 = vmatprep.subr.mxu0 0.0
        %848 = vmatpush2.msra.mxu0 0.0
        %849 = vmatprep.subr.mxu0 0.0
        %850 = vmatpush2.msra.mxu0 0.0
        %851 = vmatprep.subr.mxu0 0.0
        %852 = vmatpush2.msra.mxu0 0.0
        %853 = vmatprep.subr.mxu0 0.0
        %854 = vmatpush2.msra.mxu0 0.0
        %855 = vmatprep.subr.mxu0 0.0
        %856 = vmatpush2.msra.mxu0 0.0
        %857 = vmatprep.subr.mxu0 0.0
        %858 = vmatpush2.msra.mxu0 0.0
        %859 = vmatprep.subr.mxu0 0.0
        %860 = vmatpush2.msra.mxu0 0.0
        %861 = vmatprep.subr.mxu0 0.0
        %862 = vmatpush2.msra.mxu0 0.0
        %863 = vmatprep.subr.mxu0 0.0
        %864 = vmatpush2.msra.mxu0 0.0
        %865 = vmatprep.subr.mxu0 0.0
        %866 = vmatpush2.msra.mxu0 0.0
        %867 = vmatprep.subr.mxu0 0.0
        %868 = vmatpush2.msra.mxu0 0.0
        %869 = vmatprep.subr.mxu0 0.0
        %870 = vmatpush2.msra.mxu0 0.0
        %871 = vmatprep.subr.mxu0 0.0
        %872 = vmatpush2.msra.mxu0 0.0
        %873 = vmatprep.subr.mxu0 0.0
        %874 = vmatpush2.msra.mxu0 0.0
        %875 = vmatprep.mubr.f32.mxu0 0.0
        %876 = vmatmul.mubr.f32.gmra.mxu0 %v809
        %v877 = vpop.f32.mrf.mxu0
        %v878 = vadd.f32 %v801, %v877
        %v879 = vpop.f32.mrf.mxu0
        %880 = vdwg.mxu0
        %v881 = vld [vmem:[%s8] sm:$0x1]
        %v883 = vlaneseq
        %v884 = vshrl.u32 %v883, 7
        %v885 = vsub.s32 0, %v884
        %v886 = vrot.slane %v881, %v885
        %v888 = vadd.f32 %v878, %v886
        %890 = vrot.lane.b32.xlu0 %v888, 96
        %v891 = vpop.permute.xlu0 %890
        %v892 = vsel %vm730, %v888, 0
        %v894 = vsel %vm730, %v891, 0
        %896 = vmatprep.subr.mxu0 0.0
        %897 = vmatpush1.xpose.msra.mxu0 0.0
        %898 = vmatprep.subr.mxu0 0.0
        %899 = vmatpush1.xpose.msra.mxu0 0.0
        %900 = vmatprep.subr.mxu0 0.0
        %901 = vmatpush1.xpose.msra.mxu0 0.0
        %902 = vmatprep.subr.mxu0 0.0
        %903 = vmatpush1.xpose.msra.mxu0 0.0
        %904 = vmatprep.subr.mxu0 0.0
        %905 = vmatpush1.xpose.msra.mxu0 0.0
        %906 = vmatprep.subr.mxu0 0.0
        %907 = vmatpush1.xpose.msra.mxu0 0.0
        %908 = vmatprep.subr.mxu0 0.0
        %909 = vmatpush1.xpose.msra.mxu0 0.0
        %910 = vmatprep.subr.mxu0 0.0
        %911 = vmatpush1.xpose.msra.mxu0 0.0
        %912 = vmatprep.subr.mxu0 0.0
        %913 = vmatpush1.xpose.msra.mxu0 0.0
        %914 = vmatprep.subr.mxu0 0.0
        %915 = vmatpush1.xpose.msra.mxu0 0.0
        %916 = vmatprep.subr.mxu0 0.0
        %917 = vmatpush1.xpose.msra.mxu0 0.0
        %918 = vmatprep.subr.mxu0 0.0
        %919 = vmatpush1.xpose.msra.mxu0 0.0
        %920 = vmatprep.subr.mxu0 0.0
        %921 = vmatpush1.xpose.msra.mxu0 0.0
        %922 = vmatprep.subr.mxu0 0.0
        %923 = vmatpush1.xpose.msra.mxu0 0.0
        %924 = vmatprep.subr.mxu0 0.0
        %925 = vmatpush1.xpose.msra.mxu0 0.0
        %926 = vmatprep.subr.mxu0 0.0
        %927 = vmatpush1.xpose.msra.mxu0 %v894
        %928 = vmatprep.subr.mxu0 0.0
        %929 = vmatpush2.xpose.msra.mxu0 0.0
        %930 = vmatprep.subr.mxu0 0.0
        %931 = vmatpush2.xpose.msra.mxu0 0.0
        %932 = vmatprep.subr.mxu0 0.0
        %933 = vmatpush2.xpose.msra.mxu0 0.0
        %934 = vmatprep.subr.mxu0 0.0
        %935 = vmatpush2.xpose.msra.mxu0 0.0
        %936 = vmatprep.subr.mxu0 0.0
        %937 = vmatpush2.xpose.msra.mxu0 0.0
        %938 = vmatprep.subr.mxu0 0.0
        %939 = vmatpush2.xpose.msra.mxu0 0.0
        %940 = vmatprep.subr.mxu0 0.0
        %941 = vmatpush2.xpose.msra.mxu0 0.0
        %942 = vmatprep.subr.mxu0 0.0
        %943 = vmatpush2.xpose.msra.mxu0 0.0
        %944 = vmatprep.subr.mxu0 0.0
        %945 = vmatpush2.xpose.msra.mxu0 0.0
        %946 = vmatprep.subr.mxu0 0.0
        %947 = vmatpush2.xpose.msra.mxu0 0.0
        %948 = vmatprep.subr.mxu0 0.0
        %949 = vmatpush2.xpose.msra.mxu0 0.0
        %950 = vmatprep.subr.mxu0 0.0
        %951 = vmatpush2.xpose.msra.mxu0 0.0
        %952 = vmatprep.subr.mxu0 0.0
        %953 = vmatpush2.xpose.msra.mxu0 0.0
        %954 = vmatprep.subr.mxu0 0.0
        %955 = vmatpush2.xpose.msra.mxu0 0.0
        %956 = vmatprep.subr.mxu0 0.0
        %957 = vmatpush2.xpose.msra.mxu0 0.0
        %958 = vmatprep.subr.mxu0 0.0
        %959 = vmatpush2.xpose.msra.mxu0 0.0
        %960 = vmatprep.mubr.f32.mxu0 0.0
        %961 = vmatmul.mubr.f32.gmra.mxu0 %v892
        %v962 = vpop.f32.mrf.mxu0
        %v963 = vadd.f32 0.0, %v962
        %v964 = vpop.f32.mrf.mxu0
        %965 = vdwg.mxu0
        %v966 = vmul.f32 %v963, 0.17677669
        %v967 = vsel %vm730, %v966, -inf
        %v968 = vrot.slane %v967, 4
        %v969 = vmax.f32 %v967, %v968
        %v970 = vrot.slane %v969, 2
        %v971 = vmax.f32 %v969, %v970
        %v972 = vrot.slane %v971, 1
        %v973 = vmax.f32 %v971, %v972
        %v974 = vsub.f32 %v966, %v973
        %v975 = vmul.f32 %v974, 1.442695
        %v976 = vpow.pop %v975
        %v977 = vsel %vm730, %v976, 0.0
        %v978 = vrot.slane %v977, 4
        %v979 = vadd.f32 %v977, %v978
        %v980 = vrot.slane %v979, 2
        %v981 = vadd.f32 %v979, %v980
        %v982 = vrot.slane %v981, 1
        %v983 = vadd.f32 %v981, %v982
        %v984 = vrcp.pop %v983
        %v985 = vmul.f32 %v976, %v984
        %986 = vrot.lane.b32.xlu0 %v888, 64
        %v987 = vpop.permute.xlu0 %986
        %v990 = vsel %vm730, %v985, 0
        %992 = vmatprep.subr.mxu0 0.0
        %993 = vmatpush1.msra.mxu0 0.0
        %994 = vmatprep.subr.mxu0 0.0
        %995 = vmatpush1.msra.mxu0 0.0
        %996 = vmatprep.subr.mxu0 0.0
        %997 = vmatpush1.msra.mxu0 0.0
        %998 = vmatprep.subr.mxu0 0.0
        %999 = vmatpush1.msra.mxu0 0.0
        %1000 = vmatprep.subr.mxu0 0.0
        %1001 = vmatpush1.msra.mxu0 0.0
        %1002 = vmatprep.subr.mxu0 0.0
        %1003 = vmatpush1.msra.mxu0 0.0
        %1004 = vmatprep.subr.mxu0 0.0
        %1005 = vmatpush1.msra.mxu0 0.0
        %1006 = vmatprep.subr.mxu0 0.0
        %1007 = vmatpush1.msra.mxu0 0.0
        %1008 = vmatprep.subr.mxu0 0.0
        %1009 = vmatpush1.msra.mxu0 0.0
        %1010 = vmatprep.subr.mxu0 0.0
        %1011 = vmatpush1.msra.mxu0 0.0
        %1012 = vmatprep.subr.mxu0 0.0
        %1013 = vmatpush1.msra.mxu0 0.0
        %1014 = vmatprep.subr.mxu0 0.0
        %1015 = vmatpush1.msra.mxu0 0.0
        %1016 = vmatprep.subr.mxu0 0.0
        %1017 = vmatpush1.msra.mxu0 0.0
        %1018 = vmatprep.subr.mxu0 0.0
        %1019 = vmatpush1.msra.mxu0 0.0
        %1020 = vmatprep.subr.mxu0 0.0
        %1021 = vmatpush1.msra.mxu0 0.0
        %1022 = vmatprep.subr.mxu0 0.0
        %1023 = vmatpush1.msra.mxu0 %v987
        %1024 = vmatprep.subr.mxu0 0.0
        %1025 = vmatpush2.msra.mxu0 0.0
        %1026 = vmatprep.subr.mxu0 0.0
        %1027 = vmatpush2.msra.mxu0 0.0
        %1028 = vmatprep.subr.mxu0 0.0
        %1029 = vmatpush2.msra.mxu0 0.0
        %1030 = vmatprep.subr.mxu0 0.0
        %1031 = vmatpush2.msra.mxu0 0.0
        %1032 = vmatprep.subr.mxu0 0.0
        %1033 = vmatpush2.msra.mxu0 0.0
        %1034 = vmatprep.subr.mxu0 0.0
        %1035 = vmatpush2.msra.mxu0 0.0
        %1036 = vmatprep.subr.mxu0 0.0
        %1037 = vmatpush2.msra.mxu0 0.0
        %1038 = vmatprep.subr.mxu0 0.0
        %1039 = vmatpush2.msra.mxu0 0.0
        %1040 = vmatprep.subr.mxu0 0.0
        %1041 = vmatpush2.msra.mxu0 0.0
        %1042 = vmatprep.subr.mxu0 0.0
        %1043 = vmatpush2.msra.mxu0 0.0
        %1044 = vmatprep.subr.mxu0 0.0
        %1045 = vmatpush2.msra.mxu0 0.0
        %1046 = vmatprep.subr.mxu0 0.0
        %1047 = vmatpush2.msra.mxu0 0.0
        %1048 = vmatprep.subr.mxu0 0.0
        %1049 = vmatpush2.msra.mxu0 0.0
        %1050 = vmatprep.subr.mxu0 0.0
        %1051 = vmatpush2.msra.mxu0 0.0
        %1052 = vmatprep.subr.mxu0 0.0
        %1053 = vmatpush2.msra.mxu0 0.0
        %1054 = vmatprep.subr.mxu0 0.0
        %1055 = vmatpush2.msra.mxu0 0.0
        %1056 = vmatprep.mubr.f32.mxu0 0.0
        %1057 = vmatmul.mubr.f32.gmra.mxu0 %v990
        %v1058 = vpop.f32.mrf.mxu0
        %v1059 = vadd.f32 0.0, %v1058
        %v1060 = vpop.f32.mrf.mxu0
        %1061 = vdwg.mxu0
        %1062 = vrot.lane.b32.xlu0 %v888, 120
        %v1063 = vpop.permute.xlu0 %1062
        %1064 = vrot.lane.b32.xlu0 %v888, 88
        %v1065 = vpop.permute.xlu0 %1064
        %v1066 = vsel %vm730, %v1063, 0
        %v1068 = vsel %vm730, %v1065, 0
        %1070 = vmatprep.subr.mxu0 0.0
        %1071 = vmatpush1.xpose.msra.mxu0 0.0
        %1072 = vmatprep.subr.mxu0 0.0
        %1073 = vmatpush1.xpose.msra.mxu0 0.0
        %1074 = vmatprep.subr.mxu0 0.0
        %1075 = vmatpush1.xpose.msra.mxu0 0.0
        %1076 = vmatprep.subr.mxu0 0.0
        %1077 = vmatpush1.xpose.msra.mxu0 0.0
        %1078 = vmatprep.subr.mxu0 0.0
        %1079 = vmatpush1.xpose.msra.mxu0 0.0
        %1080 = vmatprep.subr.mxu0 0.0
        %1081 = vmatpush1.xpose.msra.mxu0 0.0
        %1082 = vmatprep.subr.mxu0 0.0
        %1083 = vmatpush1.xpose.msra.mxu0 0.0
        %1084 = vmatprep.subr.mxu0 0.0
        %1085 = vmatpush1.xpose.msra.mxu0 0.0
        %1086 = vmatprep.subr.mxu0 0.0
        %1087 = vmatpush1.xpose.msra.mxu0 0.0
        %1088 = vmatprep.subr.mxu0 0.0
        %1089 = vmatpush1.xpose.msra.mxu0 0.0
        %1090 = vmatprep.subr.mxu0 0.0
        %1091 = vmatpush1.xpose.msra.mxu0 0.0
        %1092 = vmatprep.subr.mxu0 0.0
        %1093 = vmatpush1.xpose.msra.mxu0 0.0
        %1094 = vmatprep.subr.mxu0 0.0
        %1095 = vmatpush1.xpose.msra.mxu0 0.0
        %1096 = vmatprep.subr.mxu0 0.0
        %1097 = vmatpush1.xpose.msra.mxu0 0.0
        %1098 = vmatprep.subr.mxu0 0.0
        %1099 = vmatpush1.xpose.msra.mxu0 0.0
        %1100 = vmatprep.subr.mxu0 0.0
        %1101 = vmatpush1.xpose.msra.mxu0 %v1068
        %1102 = vmatprep.subr.mxu0 0.0
        %1103 = vmatpush2.xpose.msra.mxu0 0.0
        %1104 = vmatprep.subr.mxu0 0.0
        %1105 = vmatpush2.xpose.msra.mxu0 0.0
        %1106 = vmatprep.subr.mxu0 0.0
        %1107 = vmatpush2.xpose.msra.mxu0 0.0
        %1108 = vmatprep.subr.mxu0 0.0
        %1109 = vmatpush2.xpose.msra.mxu0 0.0
        %1110 = vmatprep.subr.mxu0 0.0
        %1111 = vmatpush2.xpose.msra.mxu0 0.0
        %1112 = vmatprep.subr.mxu0 0.0
        %1113 = vmatpush2.xpose.msra.mxu0 0.0
        %1114 = vmatprep.subr.mxu0 0.0
        %1115 = vmatpush2.xpose.msra.mxu0 0.0
        %1116 = vmatprep.subr.mxu0 0.0
        %1117 = vmatpush2.xpose.msra.mxu0 0.0
        %1118 = vmatprep.subr.mxu0 0.0
        %1119 = vmatpush2.xpose.msra.mxu0 0.0
        %1120 = vmatprep.subr.mxu0 0.0
        %1121 = vmatpush2.xpose.msra.mxu0 0.0
        %1122 = vmatprep.subr.mxu0 0.0
        %1123 = vmatpush2.xpose.msra.mxu0 0.0
        %1124 = vmatprep.subr.mxu0 0.0
        %1125 = vmatpush2.xpose.msra.mxu0 0.0
        %1126 = vmatprep.subr.mxu0 0.0
        %1127 = vmatpush2.xpose.msra.mxu0 0.0
        %1128 = vmatprep.subr.mxu0 0.0
        %1129 = vmatpush2.xpose.msra.mxu0 0.0
        %1130 = vmatprep.subr.mxu0 0.0
        %1131 = vmatpush2.xpose.msra.mxu0 0.0
        %1132 = vmatprep.subr.mxu0 0.0
        %1133 = vmatpush2.xpose.msra.mxu0 0.0
        %1134 = vmatprep.mubr.f32.mxu0 0.0
        %1135 = vmatmul.mubr.f32.gmra.mxu0 %v1066
        %v1136 = vpop.f32.mrf.mxu0
        %v1137 = vadd.f32 0.0, %v1136
        %v1138 = vpop.f32.mrf.mxu0
        %1139 = vdwg.mxu0
        %v1140 = vmul.f32 %v1137, 0.17677669
        %v1141 = vsel %vm730, %v1140, -inf
        %v1142 = vrot.slane %v1141, 4
        %v1143 = vmax.f32 %v1141, %v1142
        %v1144 = vrot.slane %v1143, 2
        %v1145 = vmax.f32 %v1143, %v1144
        %v1146 = vrot.slane %v1145, 1
        %v1147 = vmax.f32 %v1145, %v1146
        %v1148 = vsub.f32 %v1140, %v1147
        %v1149 = vmul.f32 %v1148, 1.442695
        %v1150 = vpow.pop %v1149
        %v1151 = vsel %vm730, %v1150, 0.0
        %v1152 = vrot.slane %v1151, 4
        %v1153 = vadd.f32 %v1151, %v1152
        %v1154 = vrot.slane %v1153, 2
        %v1155 = vadd.f32 %v1153, %v1154
        %v1156 = vrot.slane %v1155, 1
        %v1157 = vadd.f32 %v1155, %v1156
        %v1158 = vrcp.pop %v1157
        %v1159 = vmul.f32 %v1150, %v1158
        %1160 = vrot.lane.b32.xlu0 %v888, 56
        %v1161 = vpop.permute.xlu0 %1160
        %v1164 = vsel %vm730, %v1159, 0
        %1166 = vmatprep.subr.mxu0 0.0
        %1167 = vmatpush1.msra.mxu0 0.0
        %1168 = vmatprep.subr.mxu0 0.0
        %1169 = vmatpush1.msra.mxu0 0.0
        %1170 = vmatprep.subr.mxu0 0.0
        %1171 = vmatpush1.msra.mxu0 0.0
        %1172 = vmatprep.subr.mxu0 0.0
        %1173 = vmatpush1.msra.mxu0 0.0
        %1174 = vmatprep.subr.mxu0 0.0
        %1175 = vmatpush1.msra.mxu0 0.0
        %1176 = vmatprep.subr.mxu0 0.0
        %1177 = vmatpush1.msra.mxu0 0.0
        %1178 = vmatprep.subr.mxu0 0.0
        %1179 = vmatpush1.msra.mxu0 0.0
        %1180 = vmatprep.subr.mxu0 0.0
        %1181 = vmatpush1.msra.mxu0 0.0
        %1182 = vmatprep.subr.mxu0 0.0
        %1183 = vmatpush1.msra.mxu0 0.0
        %1184 = vmatprep.subr.mxu0 0.0
        %1185 = vmatpush1.msra.mxu0 0.0
        %1186 = vmatprep.subr.mxu0 0.0
        %1187 = vmatpush1.msra.mxu0 0.0
        %1188 = vmatprep.subr.mxu0 0.0
        %1189 = vmatpush1.msra.mxu0 0.0
        %1190 = vmatprep.subr.mxu0 0.0
        %1191 = vmatpush1.msra.mxu0 0.0
        %1192 = vmatprep.subr.mxu0 0.0
        %1193 = vmatpush1.msra.mxu0 0.0
        %1194 = vmatprep.subr.mxu0 0.0
        %1195 = vmatpush1.msra.mxu0 0.0
        %1196 = vmatprep.subr.mxu0 0.0
        %1197 = vmatpush1.msra.mxu0 %v1161
        %1198 = vmatprep.subr.mxu0 0.0
        %1199 = vmatpush2.msra.mxu0 0.0
        %1200 = vmatprep.subr.mxu0 0.0
        %1201 = vmatpush2.msra.mxu0 0.0
        %1202 = vmatprep.subr.mxu0 0.0
        %1203 = vmatpush2.msra.mxu0 0.0
        %1204 = vmatprep.subr.mxu0 0.0
        %1205 = vmatpush2.msra.mxu0 0.0
        %1206 = vmatprep.subr.mxu0 0.0
        %1207 = vmatpush2.msra.mxu0 0.0
        %1208 = vmatprep.subr.mxu0 0.0
        %1209 = vmatpush2.msra.mxu0 0.0
        %1210 = vmatprep.subr.mxu0 0.0
        %1211 = vmatpush2.msra.mxu0 0.0
        %1212 = vmatprep.subr.mxu0 0.0
        %1213 = vmatpush2.msra.mxu0 0.0
        %1214 = vmatprep.subr.mxu0 0.0
        %1215 = vmatpush2.msra.mxu0 0.0
        %1216 = vmatprep.subr.mxu0 0.0
        %1217 = vmatpush2.msra.mxu0 0.0
        %1218 = vmatprep.subr.mxu0 0.0
        %1219 = vmatpush2.msra.mxu0 0.0
        %1220 = vmatprep.subr.mxu0 0.0
        %1221 = vmatpush2.msra.mxu0 0.0
        %1222 = vmatprep.subr.mxu0 0.0
        %1223 = vmatpush2.msra.mxu0 0.0
        %1224 = vmatprep.subr.mxu0 0.0
        %1225 = vmatpush2.msra.mxu0 0.0
        %1226 = vmatprep.subr.mxu0 0.0
        %1227 = vmatpush2.msra.mxu0 0.0
        %1228 = vmatprep.subr.mxu0 0.0
        %1229 = vmatpush2.msra.mxu0 0.0
        %1230 = vmatprep.mubr.f32.mxu0 0.0
        %1231 = vmatmul.mubr.f32.gmra.mxu0 %v1164
        %v1232 = vpop.f32.mrf.mxu0
        %v1233 = vadd.f32 0.0, %v1232
        %v1234 = vpop.f32.mrf.mxu0
        %1235 = vdwg.mxu0
        %1236 = vrot.lane.b32.xlu0 %v888, 112
        %v1237 = vpop.permute.xlu0 %1236
        %1238 = vrot.lane.b32.xlu0 %v888, 80
        %v1239 = vpop.permute.xlu0 %1238
        %v1240 = vsel %vm730, %v1237, 0
        %v1242 = vsel %vm730, %v1239, 0
        %1244 = vmatprep.subr.mxu0 0.0
        %1245 = vmatpush1.xpose.msra.mxu0 0.0
        %1246 = vmatprep.subr.mxu0 0.0
        %1247 = vmatpush1.xpose.msra.mxu0 0.0
        %1248 = vmatprep.subr.mxu0 0.0
        %1249 = vmatpush1.xpose.msra.mxu0 0.0
        %1250 = vmatprep.subr.mxu0 0.0
        %1251 = vmatpush1.xpose.msra.mxu0 0.0
        %1252 = vmatprep.subr.mxu0 0.0
        %1253 = vmatpush1.xpose.msra.mxu0 0.0
        %1254 = vmatprep.subr.mxu0 0.0
        %1255 = vmatpush1.xpose.msra.mxu0 0.0
        %1256 = vmatprep.subr.mxu0 0.0
        %1257 = vmatpush1.xpose.msra.mxu0 0.0
        %1258 = vmatprep.subr.mxu0 0.0
        %1259 = vmatpush1.xpose.msra.mxu0 0.0
        %1260 = vmatprep.subr.mxu0 0.0
        %1261 = vmatpush1.xpose.msra.mxu0 0.0
        %1262 = vmatprep.subr.mxu0 0.0
        %1263 = vmatpush1.xpose.msra.mxu0 0.0
        %1264 = vmatprep.subr.mxu0 0.0
        %1265 = vmatpush1.xpose.msra.mxu0 0.0
        %1266 = vmatprep.subr.mxu0 0.0
        %1267 = vmatpush1.xpose.msra.mxu0 0.0
        %1268 = vmatprep.subr.mxu0 0.0
        %1269 = vmatpush1.xpose.msra.mxu0 0.0
        %1270 = vmatprep.subr.mxu0 0.0
        %1271 = vmatpush1.xpose.msra.mxu0 0.0
        %1272 = vmatprep.subr.mxu0 0.0
        %1273 = vmatpush1.xpose.msra.mxu0 0.0
        %1274 = vmatprep.subr.mxu0 0.0
        %1275 = vmatpush1.xpose.msra.mxu0 %v1242
        %1276 = vmatprep.subr.mxu0 0.0
        %1277 = vmatpush2.xpose.msra.mxu0 0.0
        %1278 = vmatprep.subr.mxu0 0.0
        %1279 = vmatpush2.xpose.msra.mxu0 0.0
        %1280 = vmatprep.subr.mxu0 0.0
        %1281 = vmatpush2.xpose.msra.mxu0 0.0
        %1282 = vmatprep.subr.mxu0 0.0
        %1283 = vmatpush2.xpose.msra.mxu0 0.0
        %1284 = vmatprep.subr.mxu0 0.0
        %1285 = vmatpush2.xpose.msra.mxu0 0.0
        %1286 = vmatprep.subr.mxu0 0.0
        %1287 = vmatpush2.xpose.msra.mxu0 0.0
        %1288 = vmatprep.subr.mxu0 0.0
        %1289 = vmatpush2.xpose.msra.mxu0 0.0
        %1290 = vmatprep.subr.mxu0 0.0
        %1291 = vmatpush2.xpose.msra.mxu0 0.0
        %1292 = vmatprep.subr.mxu0 0.0
        %1293 = vmatpush2.xpose.msra.mxu0 0.0
        %1294 = vmatprep.subr.mxu0 0.0
        %1295 = vmatpush2.xpose.msra.mxu0 0.0
        %1296 = vmatprep.subr.mxu0 0.0
        %1297 = vmatpush2.xpose.msra.mxu0 0.0
        %1298 = vmatprep.subr.mxu0 0.0
        %1299 = vmatpush2.xpose.msra.mxu0 0.0
        %1300 = vmatprep.subr.mxu0 0.0
        %1301 = vmatpush2.xpose.msra.mxu0 0.0
        %1302 = vmatprep.subr.mxu0 0.0
        %1303 = vmatpush2.xpose.msra.mxu0 0.0
        %1304 = vmatprep.subr.mxu0 0.0
        %1305 = vmatpush2.xpose.msra.mxu0 0.0
        %1306 = vmatprep.subr.mxu0 0.0
        %1307 = vmatpush2.xpose.msra.mxu0 0.0
        %1308 = vmatprep.mubr.f32.mxu0 0.0
        %1309 = vmatmul.mubr.f32.gmra.mxu0 %v1240
        %v1310 = vpop.f32.mrf.mxu0
        %v1311 = vadd.f32 0.0, %v1310
        %v1312 = vpop.f32.mrf.mxu0
        %1313 = vdwg.mxu0
        %v1314 = vmul.f32 %v1311, 0.17677669
        %v1315 = vsel %vm730, %v1314, -inf
        %v1316 = vrot.slane %v1315, 4
        %v1317 = vmax.f32 %v1315, %v1316
        %v1318 = vrot.slane %v1317, 2
        %v1319 = vmax.f32 %v1317, %v1318
        %v1320 = vrot.slane %v1319, 1
        %v1321 = vmax.f32 %v1319, %v1320
        %v1322 = vsub.f32 %v1314, %v1321
        %v1323 = vmul.f32 %v1322, 1.442695
        %v1324 = vpow.pop %v1323
        %v1325 = vsel %vm730, %v1324, 0.0
        %v1326 = vrot.slane %v1325, 4
        %v1327 = vadd.f32 %v1325, %v1326
        %v1328 = vrot.slane %v1327, 2
        %v1329 = vadd.f32 %v1327, %v1328
        %v1330 = vrot.slane %v1329, 1
        %v1331 = vadd.f32 %v1329, %v1330
        %v1332 = vrcp.pop %v1331
        %v1333 = vmul.f32 %v1324, %v1332
        %1334 = vrot.lane.b32.xlu0 %v888, 48
        %v1335 = vpop.permute.xlu0 %1334
        %v1338 = vsel %vm730, %v1333, 0
        %1340 = vmatprep.subr.mxu0 0.0
        %1341 = vmatpush1.msra.mxu0 0.0
        %1342 = vmatprep.subr.mxu0 0.0
        %1343 = vmatpush1.msra.mxu0 0.0
        %1344 = vmatprep.subr.mxu0 0.0
        %1345 = vmatpush1.msra.mxu0 0.0
        %1346 = vmatprep.subr.mxu0 0.0
        %1347 = vmatpush1.msra.mxu0 0.0
        %1348 = vmatprep.subr.mxu0 0.0
        %1349 = vmatpush1.msra.mxu0 0.0
        %1350 = vmatprep.subr.mxu0 0.0
        %1351 = vmatpush1.msra.mxu0 0.0
        %1352 = vmatprep.subr.mxu0 0.0
        %1353 = vmatpush1.msra.mxu0 0.0
        %1354 = vmatprep.subr.mxu0 0.0
        %1355 = vmatpush1.msra.mxu0 0.0
        %1356 = vmatprep.subr.mxu0 0.0
        %1357 = vmatpush1.msra.mxu0 0.0
        %1358 = vmatprep.subr.mxu0 0.0
        %1359 = vmatpush1.msra.mxu0 0.0
        %1360 = vmatprep.subr.mxu0 0.0
        %1361 = vmatpush1.msra.mxu0 0.0
        %1362 = vmatprep.subr.mxu0 0.0
        %1363 = vmatpush1.msra.mxu0 0.0
        %1364 = vmatprep.subr.mxu0 0.0
        %1365 = vmatpush1.msra.mxu0 0.0
        %1366 = vmatprep.subr.mxu0 0.0
        %1367 = vmatpush1.msra.mxu0 0.0
        %1368 = vmatprep.subr.mxu0 0.0
        %1369 = vmatpush1.msra.mxu0 0.0
        %1370 = vmatprep.subr.mxu0 0.0
        %1371 = vmatpush1.msra.mxu0 %v1335
        %1372 = vmatprep.subr.mxu0 0.0
        %1373 = vmatpush2.msra.mxu0 0.0
        %1374 = vmatprep.subr.mxu0 0.0
        %1375 = vmatpush2.msra.mxu0 0.0
        %1376 = vmatprep.subr.mxu0 0.0
        %1377 = vmatpush2.msra.mxu0 0.0
        %1378 = vmatprep.subr.mxu0 0.0
        %1379 = vmatpush2.msra.mxu0 0.0
        %1380 = vmatprep.subr.mxu0 0.0
        %1381 = vmatpush2.msra.mxu0 0.0
        %1382 = vmatprep.subr.mxu0 0.0
        %1383 = vmatpush2.msra.mxu0 0.0
        %1384 = vmatprep.subr.mxu0 0.0
        %1385 = vmatpush2.msra.mxu0 0.0
        %1386 = vmatprep.subr.mxu0 0.0
        %1387 = vmatpush2.msra.mxu0 0.0
        %1388 = vmatprep.subr.mxu0 0.0
        %1389 = vmatpush2.msra.mxu0 0.0
        %1390 = vmatprep.subr.mxu0 0.0
        %1391 = vmatpush2.msra.mxu0 0.0
        %1392 = vmatprep.subr.mxu0 0.0
        %1393 = vmatpush2.msra.mxu0 0.0
        %1394 = vmatprep.subr.mxu0 0.0
        %1395 = vmatpush2.msra.mxu0 0.0
        %1396 = vmatprep.subr.mxu0 0.0
        %1397 = vmatpush2.msra.mxu0 0.0
        %1398 = vmatprep.subr.mxu0 0.0
        %1399 = vmatpush2.msra.mxu0 0.0
        %1400 = vmatprep.subr.mxu0 0.0
        %1401 = vmatpush2.msra.mxu0 0.0
        %1402 = vmatprep.subr.mxu0 0.0
        %1403 = vmatpush2.msra.mxu0 0.0
        %1404 = vmatprep.mubr.f32.mxu0 0.0
        %1405 = vmatmul.mubr.f32.gmra.mxu0 %v1338
        %v1406 = vpop.f32.mrf.mxu0
        %v1407 = vadd.f32 0.0, %v1406
        %v1408 = vpop.f32.mrf.mxu0
        %1409 = vdwg.mxu0
        %1410 = vrot.lane.b32.xlu0 %v888, 104
        %v1411 = vpop.permute.xlu0 %1410
        %1412 = vrot.lane.b32.xlu0 %v888, 72
        %v1413 = vpop.permute.xlu0 %1412
        %v1414 = vsel %vm730, %v1411, 0
        %v1416 = vsel %vm730, %v1413, 0
        %1418 = vmatprep.subr.mxu0 0.0
        %1419 = vmatpush1.xpose.msra.mxu0 0.0
        %1420 = vmatprep.subr.mxu0 0.0
        %1421 = vmatpush1.xpose.msra.mxu0 0.0
        %1422 = vmatprep.subr.mxu0 0.0
        %1423 = vmatpush1.xpose.msra.mxu0 0.0
        %1424 = vmatprep.subr.mxu0 0.0
        %1425 = vmatpush1.xpose.msra.mxu0 0.0
        %1426 = vmatprep.subr.mxu0 0.0
        %1427 = vmatpush1.xpose.msra.mxu0 0.0
        %1428 = vmatprep.subr.mxu0 0.0
        %1429 = vmatpush1.xpose.msra.mxu0 0.0
        %1430 = vmatprep.subr.mxu0 0.0
        %1431 = vmatpush1.xpose.msra.mxu0 0.0
        %1432 = vmatprep.subr.mxu0 0.0
        %1433 = vmatpush1.xpose.msra.mxu0 0.0
        %1434 = vmatprep.subr.mxu0 0.0
        %1435 = vmatpush1.xpose.msra.mxu0 0.0
        %1436 = vmatprep.subr.mxu0 0.0
        %1437 = vmatpush1.xpose.msra.mxu0 0.0
        %1438 = vmatprep.subr.mxu0 0.0
        %1439 = vmatpush1.xpose.msra.mxu0 0.0
        %1440 = vmatprep.subr.mxu0 0.0
        %1441 = vmatpush1.xpose.msra.mxu0 0.0
        %1442 = vmatprep.subr.mxu0 0.0
        %1443 = vmatpush1.xpose.msra.mxu0 0.0
        %1444 = vmatprep.subr.mxu0 0.0
        %1445 = vmatpush1.xpose.msra.mxu0 0.0
        %1446 = vmatprep.subr.mxu0 0.0
        %1447 = vmatpush1.xpose.msra.mxu0 0.0
        %1448 = vmatprep.subr.mxu0 0.0
        %1449 = vmatpush1.xpose.msra.mxu0 %v1416
        %1450 = vmatprep.subr.mxu0 0.0
        %1451 = vmatpush2.xpose.msra.mxu0 0.0
        %1452 = vmatprep.subr.mxu0 0.0
        %1453 = vmatpush2.xpose.msra.mxu0 0.0
        %1454 = vmatprep.subr.mxu0 0.0
        %1455 = vmatpush2.xpose.msra.mxu0 0.0
        %1456 = vmatprep.subr.mxu0 0.0
        %1457 = vmatpush2.xpose.msra.mxu0 0.0
        %1458 = vmatprep.subr.mxu0 0.0
        %1459 = vmatpush2.xpose.msra.mxu0 0.0
        %1460 = vmatprep.subr.mxu0 0.0
        %1461 = vmatpush2.xpose.msra.mxu0 0.0
        %1462 = vmatprep.subr.mxu0 0.0
        %1463 = vmatpush2.xpose.msra.mxu0 0.0
        %1464 = vmatprep.subr.mxu0 0.0
        %1465 = vmatpush2.xpose.msra.mxu0 0.0
        %1466 = vmatprep.subr.mxu0 0.0
        %1467 = vmatpush2.xpose.msra.mxu0 0.0
        %1468 = vmatprep.subr.mxu0 0.0
        %1469 = vmatpush2.xpose.msra.mxu0 0.0
        %1470 = vmatprep.subr.mxu0 0.0
        %1471 = vmatpush2.xpose.msra.mxu0 0.0
        %1472 = vmatprep.subr.mxu0 0.0
        %1473 = vmatpush2.xpose.msra.mxu0 0.0
        %1474 = vmatprep.subr.mxu0 0.0
        %1475 = vmatpush2.xpose.msra.mxu0 0.0
        %1476 = vmatprep.subr.mxu0 0.0
        %1477 = vmatpush2.xpose.msra.mxu0 0.0
        %1478 = vmatprep.subr.mxu0 0.0
        %1479 = vmatpush2.xpose.msra.mxu0 0.0
        %1480 = vmatprep.subr.mxu0 0.0
        %1481 = vmatpush2.xpose.msra.mxu0 0.0
        %1482 = vmatprep.mubr.f32.mxu0 0.0
        %1483 = vmatmul.mubr.f32.gmra.mxu0 %v1414
        %v1484 = vpop.f32.mrf.mxu0
        %v1485 = vadd.f32 0.0, %v1484
        %v1486 = vpop.f32.mrf.mxu0
        %1487 = vdwg.mxu0
        %v1488 = vmul.f32 %v1485, 0.17677669
        %v1489 = vsel %vm730, %v1488, -inf
        %v1490 = vrot.slane %v1489, 4
        %v1491 = vmax.f32 %v1489, %v1490
        %v1492 = vrot.slane %v1491, 2
        %v1493 = vmax.f32 %v1491, %v1492
        %v1494 = vrot.slane %v1493, 1
        %v1495 = vmax.f32 %v1493, %v1494
        %v1496 = vsub.f32 %v1488, %v1495
        %v1497 = vmul.f32 %v1496, 1.442695
        %v1498 = vpow.pop %v1497
        %v1499 = vsel %vm730, %v1498, 0.0
        %v1500 = vrot.slane %v1499, 4
        %v1501 = vadd.f32 %v1499, %v1500
        %v1502 = vrot.slane %v1501, 2
        %v1503 = vadd.f32 %v1501, %v1502
        %v1504 = vrot.slane %v1503, 1
        %v1505 = vadd.f32 %v1503, %v1504
        %v1506 = vrcp.pop %v1505
        %v1507 = vmul.f32 %v1498, %v1506
        %1508 = vrot.lane.b32.xlu0 %v888, 40
        %v1509 = vpop.permute.xlu0 %1508
        %v1512 = vsel %vm730, %v1507, 0
        %1514 = vmatprep.subr.mxu0 0.0
        %1515 = vmatpush1.msra.mxu0 0.0
        %1516 = vmatprep.subr.mxu0 0.0
        %1517 = vmatpush1.msra.mxu0 0.0
        %1518 = vmatprep.subr.mxu0 0.0
        %1519 = vmatpush1.msra.mxu0 0.0
        %1520 = vmatprep.subr.mxu0 0.0
        %1521 = vmatpush1.msra.mxu0 0.0
        %1522 = vmatprep.subr.mxu0 0.0
        %1523 = vmatpush1.msra.mxu0 0.0
        %1524 = vmatprep.subr.mxu0 0.0
        %1525 = vmatpush1.msra.mxu0 0.0
        %1526 = vmatprep.subr.mxu0 0.0
        %1527 = vmatpush1.msra.mxu0 0.0
        %1528 = vmatprep.subr.mxu0 0.0
        %1529 = vmatpush1.msra.mxu0 0.0
        %1530 = vmatprep.subr.mxu0 0.0
        %1531 = vmatpush1.msra.mxu0 0.0
        %1532 = vmatprep.subr.mxu0 0.0
        %1533 = vmatpush1.msra.mxu0 0.0
        %1534 = vmatprep.subr.mxu0 0.0
        %1535 = vmatpush1.msra.mxu0 0.0
        %1536 = vmatprep.subr.mxu0 0.0
        %1537 = vmatpush1.msra.mxu0 0.0
        %1538 = vmatprep.subr.mxu0 0.0
        %1539 = vmatpush1.msra.mxu0 0.0
        %1540 = vmatprep.subr.mxu0 0.0
        %1541 = vmatpush1.msra.mxu0 0.0
        %1542 = vmatprep.subr.mxu0 0.0
        %1543 = vmatpush1.msra.mxu0 0.0
        %1544 = vmatprep.subr.mxu0 0.0
        %1545 = vmatpush1.msra.mxu0 %v1509
        %1546 = vmatprep.subr.mxu0 0.0
        %1547 = vmatpush2.msra.mxu0 0.0
        %1548 = vmatprep.subr.mxu0 0.0
        %1549 = vmatpush2.msra.mxu0 0.0
        %1550 = vmatprep.subr.mxu0 0.0
        %1551 = vmatpush2.msra.mxu0 0.0
        %1552 = vmatprep.subr.mxu0 0.0
        %1553 = vmatpush2.msra.mxu0 0.0
        %1554 = vmatprep.subr.mxu0 0.0
        %1555 = vmatpush2.msra.mxu0 0.0
        %1556 = vmatprep.subr.mxu0 0.0
        %1557 = vmatpush2.msra.mxu0 0.0
        %1558 = vmatprep.subr.mxu0 0.0
        %1559 = vmatpush2.msra.mxu0 0.0
        %1560 = vmatprep.subr.mxu0 0.0
        %1561 = vmatpush2.msra.mxu0 0.0
        %1562 = vmatprep.subr.mxu0 0.0
        %1563 = vmatpush2.msra.mxu0 0.0
        %1564 = vmatprep.subr.mxu0 0.0
        %1565 = vmatpush2.msra.mxu0 0.0
        %1566 = vmatprep.subr.mxu0 0.0
        %1567 = vmatpush2.msra.mxu0 0.0
        %1568 = vmatprep.subr.mxu0 0.0
        %1569 = vmatpush2.msra.mxu0 0.0
        %1570 = vmatprep.subr.mxu0 0.0
        %1571 = vmatpush2.msra.mxu0 0.0
        %1572 = vmatprep.subr.mxu0 0.0
        %1573 = vmatpush2.msra.mxu0 0.0
        %1574 = vmatprep.subr.mxu0 0.0
        %1575 = vmatpush2.msra.mxu0 0.0
        %1576 = vmatprep.subr.mxu0 0.0
        %1577 = vmatpush2.msra.mxu0 0.0
        %1578 = vmatprep.mubr.f32.mxu0 0.0
        %1579 = vmatmul.mubr.f32.gmra.mxu0 %v1512
        %v1580 = vpop.f32.mrf.mxu0
        %v1581 = vadd.f32 0.0, %v1580
        %v1582 = vpop.f32.mrf.mxu0
        %1583 = vdwg.mxu0
        %1585 = vrot.lane.b32.xlu0 %v1233, 8
        %v1586 = vpop.permute.xlu0 %1585
        %1589 = vrot.lane.b32.xlu0 %v1407, 16
        %v1590 = vpop.permute.xlu0 %1589
        %1593 = vrot.lane.b32.xlu0 %v1581, 24
        %v1594 = vpop.permute.xlu0 %1593
        %v1596 = vsel %vm730, %v1059, %v1586
        %vm1597 = vcmask 130048
        %v1598 = vsel %vm1597, %v1596, %v1590
        %v1599 = vsel %vm643, %v1598, %v1594
        %v1600 = vld [vmem:[%s9] sm:$0xff]
        %v1601 = vld [vmem:[%s9 + $0x8] sm:$0xff]
        %v1602 = vld [vmem:[%s9 + $0x10] sm:$0xff]
        %v1603 = vld [vmem:[%s9 + $0x18] sm:$0xff]
        %v1604 = vld [vmem:[%s10] sm:$0x1]
        %v1606 = vlaneseq
        %v1607 = vshrl.u32 %v1606, 7
        %v1608 = vsub.s32 0, %v1607
        %v1609 = vrot.slane %v1604, %v1608
        %v1612 = vsel %vm569, %v1599, 0
        %1614 = vmatprep.subr.mxu0 0.0
        %1615 = vmatpush1.msra.mxu0 0.0
        %1616 = vmatprep.subr.mxu0 0.0
        %1617 = vmatpush1.msra.mxu0 0.0
        %1618 = vmatprep.subr.mxu0 0.0
        %1619 = vmatpush1.msra.mxu0 0.0
        %1620 = vmatprep.subr.mxu0 0.0
        %1621 = vmatpush1.msra.mxu0 0.0
        %1622 = vmatprep.subr.mxu0 0.0
        %1623 = vmatpush1.msra.mxu0 0.0
        %1624 = vmatprep.subr.mxu0 0.0
        %1625 = vmatpush1.msra.mxu0 0.0
        %1626 = vmatprep.subr.mxu0 0.0
        %1627 = vmatpush1.msra.mxu0 0.0
        %1628 = vmatprep.subr.mxu0 0.0
        %1629 = vmatpush1.msra.mxu0 0.0
        %1630 = vmatprep.subr.mxu0 0.0
        %1631 = vmatpush1.msra.mxu0 0.0
        %1632 = vmatprep.subr.mxu0 0.0
        %1633 = vmatpush1.msra.mxu0 0.0
        %1634 = vmatprep.subr.mxu0 0.0
        %1635 = vmatpush1.msra.mxu0 0.0
        %1636 = vmatprep.subr.mxu0 0.0
        %1637 = vmatpush1.msra.mxu0 0.0
        %1638 = vmatprep.subr.mxu0 0.0
        %1639 = vmatpush1.msra.mxu0 %v1603
        %1640 = vmatprep.subr.mxu0 0.0
        %1641 = vmatpush1.msra.mxu0 %v1602
        %1642 = vmatprep.subr.mxu0 0.0
        %1643 = vmatpush1.msra.mxu0 %v1601
        %1644 = vmatprep.subr.mxu0 0.0
        %1645 = vmatpush1.msra.mxu0 %v1600
        %1646 = vmatprep.subr.mxu0 0.0
        %1647 = vmatpush2.msra.mxu0 0.0
        %1648 = vmatprep.subr.mxu0 0.0
        %1649 = vmatpush2.msra.mxu0 0.0
        %1650 = vmatprep.subr.mxu0 0.0
        %1651 = vmatpush2.msra.mxu0 0.0
        %1652 = vmatprep.subr.mxu0 0.0
        %1653 = vmatpush2.msra.mxu0 0.0
        %1654 = vmatprep.subr.mxu0 0.0
        %1655 = vmatpush2.msra.mxu0 0.0
        %1656 = vmatprep.subr.mxu0 0.0
        %1657 = vmatpush2.msra.mxu0 0.0
        %1658 = vmatprep.subr.mxu0 0.0
        %1659 = vmatpush2.msra.mxu0 0.0
        %1660 = vmatprep.subr.mxu0 0.0
        %1661 = vmatpush2.msra.mxu0 0.0
        %1662 = vmatprep.subr.mxu0 0.0
        %1663 = vmatpush2.msra.mxu0 0.0
        %1664 = vmatprep.subr.mxu0 0.0
        %1665 = vmatpush2.msra.mxu0 0.0
        %1666 = vmatprep.subr.mxu0 0.0
        %1667 = vmatpush2.msra.mxu0 0.0
        %1668 = vmatprep.subr.mxu0 0.0
        %1669 = vmatpush2.msra.mxu0 0.0
        %1670 = vmatprep.subr.mxu0 0.0
        %1671 = vmatpush2.msra.mxu0 0.0
        %1672 = vmatprep.subr.mxu0 0.0
        %1673 = vmatpush2.msra.mxu0 0.0
        %1674 = vmatprep.subr.mxu0 0.0
        %1675 = vmatpush2.msra.mxu0 0.0
        %1676 = vmatprep.subr.mxu0 0.0
        %1677 = vmatpush2.msra.mxu0 0.0
        %1678 = vmatprep.mubr.f32.mxu0 0.0
        %1679 = vmatmul.mubr.f32.gmra.mxu0 %v1612
        %v1680 = vpop.f32.mrf.mxu0
        %v1681 = vadd.f32 %v1609, %v1680
        %v1682 = vpop.f32.mrf.mxu0
        %1683 = vdwg.mxu0
        %v1684 = vld [vmem:[%s11] sm:$0xff]
        %v1685 = vld [vmem:[%s11 + $0x8] sm:$0xff]
        %v1686 = vld [vmem:[%s11 + $0x10] sm:$0xff]
        %v1687 = vld [vmem:[%s11 + $0x18] sm:$0xff]
        %v1688 = vld [vmem:[%s12] sm:$0x1]
        %v1690 = vlaneseq
        %v1691 = vshrl.u32 %v1690, 7
        %v1692 = vsub.s32 0, %v1691
        %v1693 = vrot.slane %v1688, %v1692
        %v1696 = vsel %vm569, %v1681, 0
        %1698 = vmatprep.subr.mxu0 0.0
        %1699 = vmatpush1.msra.mxu0 0.0
        %1700 = vmatprep.subr.mxu0 0.0
        %1701 = vmatpush1.msra.mxu0 0.0
        %1702 = vmatprep.subr.mxu0 0.0
        %1703 = vmatpush1.msra.mxu0 0.0
        %1704 = vmatprep.subr.mxu0 0.0
        %1705 = vmatpush1.msra.mxu0 0.0
        %1706 = vmatprep.subr.mxu0 0.0
        %1707 = vmatpush1.msra.mxu0 0.0
        %1708 = vmatprep.subr.mxu0 0.0
        %1709 = vmatpush1.msra.mxu0 0.0
        %1710 = vmatprep.subr.mxu0 0.0
        %1711 = vmatpush1.msra.mxu0 0.0
        %1712 = vmatprep.subr.mxu0 0.0
        %1713 = vmatpush1.msra.mxu0 0.0
        %1714 = vmatprep.subr.mxu0 0.0
        %1715 = vmatpush1.msra.mxu0 0.0
        %1716 = vmatprep.subr.mxu0 0.0
        %1717 = vmatpush1.msra.mxu0 0.0
        %1718 = vmatprep.subr.mxu0 0.0
        %1719 = vmatpush1.msra.mxu0 0.0
        %1720 = vmatprep.subr.mxu0 0.0
        %1721 = vmatpush1.msra.mxu0 0.0
        %1722 = vmatprep.subr.mxu0 0.0
        %1723 = vmatpush1.msra.mxu0 %v1687
        %1724 = vmatprep.subr.mxu0 0.0
        %1725 = vmatpush1.msra.mxu0 %v1686
        %1726 = vmatprep.subr.mxu0 0.0
        %1727 = vmatpush1.msra.mxu0 %v1685
        %1728 = vmatprep.subr.mxu0 0.0
        %1729 = vmatpush1.msra.mxu0 %v1684
        %1730 = vmatprep.subr.mxu0 0.0
        %1731 = vmatpush2.msra.mxu0 0.0
        %1732 = vmatprep.subr.mxu0 0.0
        %1733 = vmatpush2.msra.mxu0 0.0
        %1734 = vmatprep.subr.mxu0 0.0
        %1735 = vmatpush2.msra.mxu0 0.0
        %1736 = vmatprep.subr.mxu0 0.0
        %1737 = vmatpush2.msra.mxu0 0.0
        %1738 = vmatprep.subr.mxu0 0.0
        %1739 = vmatpush2.msra.mxu0 0.0
        %1740 = vmatprep.subr.mxu0 0.0
        %1741 = vmatpush2.msra.mxu0 0.0
        %1742 = vmatprep.subr.mxu0 0.0
        %1743 = vmatpush2.msra.mxu0 0.0
        %1744 = vmatprep.subr.mxu0 0.0
        %1745 = vmatpush2.msra.mxu0 0.0
        %1746 = vmatprep.subr.mxu0 0.0
        %1747 = vmatpush2.msra.mxu0 0.0
        %1748 = vmatprep.subr.mxu0 0.0
        %1749 = vmatpush2.msra.mxu0 0.0
        %1750 = vmatprep.subr.mxu0 0.0
        %1751 = vmatpush2.msra.mxu0 0.0
        %1752 = vmatprep.subr.mxu0 0.0
        %1753 = vmatpush2.msra.mxu0 0.0
        %1754 = vmatprep.subr.mxu0 0.0
        %1755 = vmatpush2.msra.mxu0 0.0
        %1756 = vmatprep.subr.mxu0 0.0
        %1757 = vmatpush2.msra.mxu0 0.0
        %1758 = vmatprep.subr.mxu0 0.0
        %1759 = vmatpush2.msra.mxu0 0.0
        %1760 = vmatprep.subr.mxu0 0.0
        %1761 = vmatpush2.msra.mxu0 0.0
        %1762 = vmatprep.mubr.f32.mxu0 0.0
        %1763 = vmatmul.mubr.f32.gmra.mxu0 %v1696
        %v1764 = vpop.f32.mrf.mxu0
        %v1765 = vadd.f32 %v1693, %v1764
        %v1766 = vpop.f32.mrf.mxu0
        %1767 = vdwg.mxu0
        %v1768 = vmax.f32 %v1765, 0.0
        %v1769 = vld [vmem:[%s13] sm:$0xff]
        %v1770 = vld [vmem:[%s13 + $0x8] sm:$0xff]
        %v1771 = vld [vmem:[%s13 + $0x10] sm:$0xff]
        %v1772 = vld [vmem:[%s13 + $0x18] sm:$0xff]
        %v1773 = vld [vmem:[%s13 + $0x20] sm:$0xff]
        %v1774 = vld [vmem:[%s13 + $0x28] sm:$0xff]
        %v1775 = vld [vmem:[%s13 + $0x30] sm:$0xff]
        %v1776 = vld [vmem:[%s13 + $0x38] sm:$0xff]
        %v1777 = vld [vmem:[%s14] sm:$0x1]
        %v1779 = vlaneseq
        %v1780 = vshrl.u32 %v1779, 7
        %v1781 = vsub.s32 0, %v1780
        %v1782 = vrot.slane %v1777, %v1781
        %vm1784 = vcmask 523264
        %v1786 = vsel %vm1784, %v1768, 0
        %1788 = vmatprep.subr.mxu0 0.0
        %1789 = vmatpush1.msra.mxu0 0.0
        %1790 = vmatprep.subr.mxu0 0.0
        %1791 = vmatpush1.msra.mxu0 0.0
        %1792 = vmatprep.subr.mxu0 0.0
        %1793 = vmatpush1.msra.mxu0 0.0
        %1794 = vmatprep.subr.mxu0 0.0
        %1795 = vmatpush1.msra.mxu0 0.0
        %1796 = vmatprep.subr.mxu0 0.0
        %1797 = vmatpush1.msra.mxu0 0.0
        %1798 = vmatprep.subr.mxu0 0.0
        %1799 = vmatpush1.msra.mxu0 0.0
        %1800 = vmatprep.subr.mxu0 0.0
        %1801 = vmatpush1.msra.mxu0 0.0
        %1802 = vmatprep.subr.mxu0 0.0
        %1803 = vmatpush1.msra.mxu0 0.0
        %1804 = vmatprep.subr.mxu0 0.0
        %1805 = vmatpush1.msra.mxu0 %v1776
        %1806 = vmatprep.subr.mxu0 0.0
        %1807 = vmatpush1.msra.mxu0 %v1775
        %1808 = vmatprep.subr.mxu0 0.0
        %1809 = vmatpush1.msra.mxu0 %v1774
        %1810 = vmatprep.subr.mxu0 0.0
        %1811 = vmatpush1.msra.mxu0 %v1773
        %1812 = vmatprep.subr.mxu0 0.0
        %1813 = vmatpush1.msra.mxu0 %v1772
        %1814 = vmatprep.subr.mxu0 0.0
        %1815 = vmatpush1.msra.mxu0 %v1771
        %1816 = vmatprep.subr.mxu0 0.0
        %1817 = vmatpush1.msra.mxu0 %v1770
        %1818 = vmatprep.subr.mxu0 0.0
        %1819 = vmatpush1.msra.mxu0 %v1769
        %1820 = vmatprep.subr.mxu0 0.0
        %1821 = vmatpush2.msra.mxu0 0.0
        %1822 = vmatprep.subr.mxu0 0.0
        %1823 = vmatpush2.msra.mxu0 0.0
        %1824 = vmatprep.subr.mxu0 0.0
        %1825 = vmatpush2.msra.mxu0 0.0
        %1826 = vmatprep.subr.mxu0 0.0
        %1827 = vmatpush2.msra.mxu0 0.0
        %1828 = vmatprep.subr.mxu0 0.0
        %1829 = vmatpush2.msra.mxu0 0.0
        %1830 = vmatprep.subr.mxu0 0.0
        %1831 = vmatpush2.msra.mxu0 0.0
        %1832 = vmatprep.subr.mxu0 0.0
        %1833 = vmatpush2.msra.mxu0 0.0
        %1834 = vmatprep.subr.mxu0 0.0
        %1835 = vmatpush2.msra.mxu0 0.0
        %1836 = vmatprep.subr.mxu0 0.0
        %1837 = vmatpush2.msra.mxu0 0.0
        %1838 = vmatprep.subr.mxu0 0.0
        %1839 = vmatpush2.msra.mxu0 0.0
        %1840 = vmatprep.subr.mxu0 0.0
        %1841 = vmatpush2.msra.mxu0 0.0
        %1842 = vmatprep.subr.mxu0 0.0
        %1843 = vmatpush2.msra.mxu0 0.0
        %1844 = vmatprep.subr.mxu0 0.0
        %1845 = vmatpush2.msra.mxu0 0.0
        %1846 = vmatprep.subr.mxu0 0.0
        %1847 = vmatpush2.msra.mxu0 0.0
        %1848 = vmatprep.subr.mxu0 0.0
        %1849 = vmatpush2.msra.mxu0 0.0
        %1850 = vmatprep.subr.mxu0 0.0
        %1851 = vmatpush2.msra.mxu0 0.0
        %1852 = vmatprep.mubr.f32.mxu0 0.0
        %1853 = vmatmul.mubr.f32.gmra.mxu0 %v1786
        %v1854 = vpop.f32.mrf.mxu0
        %v1855 = vadd.f32 %v1782, %v1854
        %v1856 = vpop.f32.mrf.mxu0
        %1857 = vdwg.mxu0
        %v1858 = vld [vmem:[%s15] sm:$0xff]
        %v1859 = vmul.f32 %v1858, %v1855
        %v1860 = vsel %vm569, %v1859, 0.0
        %v1861 = vrot.slane %v1860, 4
        %v1862 = vadd.f32 %v1860, %v1861
        %v1863 = vrot.slane %v1862, 2
        %v1864 = vadd.f32 %v1862, %v1863
        %v1865 = vrot.slane %v1864, 1
        %v1866 = vadd.f32 %v1864, %v1865
        %1868 = vrot.lane.b32.xlu0 %v1866, 32
        %v1869 = vpop.permute.xlu0 %1868
        %v1871 = vmul.f32 %v724, %v1869
        %1873 = vrot.lane.b32.xlu0 %v725, 64
        %v1874 = vpop.permute.xlu0 %1873
        %v1876 = vmul.f32 %v724, %v1874
        %1878 = vrot.lane.b32.xlu0 %v1876, 32
        %v1879 = vpop.permute.xlu0 %1878
        %v1881 = vadd.f32 %v1871, %v1879
        %v1882 = vtanh.pop %v1881
        %1884 = vrot.lane.b32.xlu0 %v1882, 64
        %v1885 = vpop.permute.xlu0 %1884
        %v1887 = vmul.f32 %v724, %v1885
        %1889 = vrot.lane.b32.xlu0 %v1887, 32
        %v1890 = vpop.permute.xlu0 %1889
        %vm1892 = vcmask 253952
        %1893 = vst.msk [vmem:[#allocation2] sm:$0x1] %vm1892, %v1890
        %1894 = vst.msk [vmem:[%s541] sm:$0x1] %vm1892, %v1890
        %s1895 = sand.u32 %s385, 1
        %s1896 = scalar_lea.sflag [#allocation5], %s1895
        %s1897 = sand.u32 %s385, 1
        %s1898 = scalar_lea.vmem [#allocation6], %s1897
        // Predicated region
        $region93: #{tpu_custom_call.1} parent=83 // pred_check
          %p1899 = pneg %p395
        $region94: #{tpu_custom_call.1} parent=83 // pred_check_branch
          %1901 = sbr.rel (%p1899) target = $region96
        $region95: #{tpu_custom_call.1} parent=83 // pred_region
          %s1903 = ssub.s32 16, 16
          %1904 = vsyncadd %s1896, %s1903
          %s1905 = smul.addr %s31, 16
          %s1906 = scalar_lea.hbm %s16, %s1905
          %s1908 = sshll.u32 %s1898, 4
          %s1909 = int_to_ptr.vmem [resolvable:$true] %s1908
          %1911 = dma.vmem_to_hbm [thread:$0]  %s1909, 16, %s1906, %s1896
        $region96: #{tpu_custom_call.1} parent=83 // pred_fallthru
          _
      $region84: #{tpu_custom_call.1} parent=5 // pred_fallthru
        _
      %p1912 = scmp.le.s32.totalorder 2, %s26
      // Predicated region
      $region97: #{tpu_custom_call.1} parent=5 // pred_check
        %p1913 = pneg %p1912
      $region98: #{tpu_custom_call.1} parent=5 // pred_check_branch
        %1915 = sbr.rel (%p1913) target = $region100
      $region99: #{tpu_custom_call.1} parent=5 // pred_region
        %s1916 = ssub.s32 %s26, 2
        // Predicated region
        $region101: #{tpu_custom_call.1} parent=99 // pred_check
          %p1917 = pneg %p401
        $region102: #{tpu_custom_call.1} parent=99 // pred_check_branch
          %1919 = sbr.rel (%p1917) target = $region104
        $region103: #{tpu_custom_call.1} parent=99 // pred_region
          %s1920 = sand.u32 %s386, 1
          %s1921 = scalar_lea.sflag [#allocation5], %s1920
          %s1922 = sand.u32 %s386, 1
          %s1923 = scalar_lea.vmem [#allocation6], %s1922
          %1924 = dma.done %s1921, 16
        $region104: #{tpu_custom_call.1} parent=99 // pred_fallthru
          _
      $region100: #{tpu_custom_call.1} parent=5 // pred_fallthru
        _
    $region6: #{tpu_custom_call.1} parent=1 // loop_footer
      %s30 = sadd.s32 1, %s26
    $region7: #{tpu_custom_call.1} parent=1 // loop_footer_branch
      %25 = sbr.rel target = $region3
    $region8: #{tpu_custom_call.1} parent=1 // loop_exit
      _
    %1925 = vsyncpa [#allocation4], 1
    %s1926 = scalar_lea.sflag [#allocation4], 1
    %1927 = vsyncpa %s1926, 1
    %1928 = vsyncpa [#allocation5], 1
    %s1929 = scalar_lea.sflag [#allocation5], 1
    %1930 = vsyncpa %s1929, 1

</llo_original>
